<compile_context>
chip_gen: v7x
topology: tpu7x:2x2x1
jax: 0.10.0
libtpu: 0.0.40
codegen_flags: <defaults>
</compile_context>

<pallas_src>
import functools

import jax
import jax.numpy as jnp
from jax.experimental import pallas as pl
from jax.experimental.pallas import tpu as pltpu


# ----------------------------------------------------------------------------
# entry_distance_matrix (glue, computed once in plain JAX, passed to kernel)
# ----------------------------------------------------------------------------
def entry_distance_matrix(n):
    A = jnp.triu(jnp.ones((n, n), dtype=jnp.float32), 0)
    A = A @ A
    A = A + jnp.triu(A, 1).T
    return A


# ----------------------------------------------------------------------------
# Pallas kernel: GeneratorNMP forward for one batch tile (B_TILE examples)
# ----------------------------------------------------------------------------
def _generator_nmp_kernel(iters, b_tile, n, f, hidden,
                          x_ref, a0_ref,
                          ew0_ref, eb0_ref, ew1_ref, eb1_ref,
                          wm_ref, bm_ref, wu_ref, bu_ref, wa_ref,
                          out_ref):
    f32 = jnp.float32
    bf16 = jnp.bfloat16
    bn = b_tile * n

    # Flatten (b_tile, n, f) -> (b_tile*n, f): per-vertex linears become one
    # big MXU matmul over the batch tile.
    x = x_ref[...].reshape(bn, f).astype(bf16)

    # --- embedding: 2 x (Linear + ReLU)  (emb_init = 2) ---
    h = jnp.dot(x, ew0_ref[...], preferred_element_type=f32) + eb0_ref[...]
    h = jnp.maximum(h, 0.0)
    h = jnp.dot(h.astype(bf16), ew1_ref[...], preferred_element_type=f32) + eb1_ref[...]
    h = jnp.maximum(h, 0.0)                                   # (bn, hidden) f32

    # initial adjacency: entry distance matrix replicated over the batch tile
    A = jnp.broadcast_to(a0_ref[...], (b_tile, n, n))         # (b, n, n) f32

    # --- message passing iterations (iters is small -> static unroll) ---
    for i in range(iters):
        # message: m = A @ (h Wm + bm)
        m = jnp.dot(h.astype(bf16), wm_ref[i],
                    preferred_element_type=f32) + bm_ref[i]   # (bn, hidden)
        m = jnp.einsum('bij,bjk->bik',
                       A.astype(bf16),
                       m.reshape(b_tile, n, hidden).astype(bf16),
                       preferred_element_type=f32)            # (b, n, hidden)

        # update: h = tanh([h, m] Wu + bu)   with fused Wu = [Wu_h ; Wu_m]
        hm = jnp.concatenate([h, m.reshape(bn, hidden)], axis=-1).astype(bf16)
        h = jnp.tanh(jnp.dot(hm, wu_ref[i],
                             preferred_element_type=f32) + bu_ref[i])

        # matrix: A = sigmoid((h Wa) (h Wa)^T) -- contract last dims directly,
        # no explicit transpose.
        e = jnp.dot(h.astype(bf16), wa_ref[i], preferred_element_type=f32)
        e = e.reshape(b_tile, n, hidden).astype(bf16)
        A = jax.nn.sigmoid(jnp.einsum('bik,bjk->bij', e, e,
                                      preferred_element_type=f32))

    out_ref[...] = A.astype(out_ref.dtype)


# ----------------------------------------------------------------------------
# Batch-tile selection: fill the MXU M dimension (target b_tile*n >= 256)
# while keeping >= 2 grid steps (v7x dual TensorCore) and dividing bs evenly.
# ----------------------------------------------------------------------------
def _pick_b_tile(bs, n):
    desired = max(1, 256 // max(n, 1))
    if bs > 1:
        desired = max(1, min(desired, bs // 2))   # keep >= 2 grid steps
    for t in range(min(desired, bs), 0, -1):
        if bs % t == 0:
            return t
    return 1


# ----------------------------------------------------------------------------
# Wrapper
# ----------------------------------------------------------------------------
def generator_nmp(x, params):
    bs, n, f = x.shape
    hidden = params["ew0"].shape[1]
    iters = params["wm"].shape[0]
    b_tile = _pick_b_tile(bs, n)
    grid = bs // b_tile

    a0 = entry_distance_matrix(n)  # (n, n), replicated across the grid

    bf16 = jnp.bfloat16
    # Cast matmul weights to bf16 once (outside the kernel); biases stay f32.
    ew0 = params["ew0"].astype(bf16)
    ew1 = params["ew1"].astype(bf16)
    wm = params["wm"].astype(bf16)
    wa = params["wa"].astype(bf16)
    # Fused update weight: [Wu_h ; Wu_m] -> (iters, 2*hidden, hidden)
    wu = jnp.concatenate([params["wuh"], params["wum"]], axis=1).astype(bf16)

    kernel = functools.partial(_generator_nmp_kernel, iters, b_tile, n, f, hidden)

    in_specs = [
        pl.BlockSpec((b_tile, n, f), lambda b: (b, 0, 0)),             # x
        pl.BlockSpec((n, n), lambda b: (0, 0)),                        # A0
        pl.BlockSpec((f, hidden), lambda b: (0, 0)),                   # ew0
        pl.BlockSpec((1, hidden), lambda b: (0, 0)),                   # eb0
        pl.BlockSpec((hidden, hidden), lambda b: (0, 0)),              # ew1
        pl.BlockSpec((1, hidden), lambda b: (0, 0)),                   # eb1
        pl.BlockSpec((iters, hidden, hidden), lambda b: (0, 0, 0)),    # wm
        pl.BlockSpec((iters, 1, hidden), lambda b: (0, 0, 0)),         # bm
        pl.BlockSpec((iters, 2 * hidden, hidden), lambda b: (0, 0, 0)),# wu (fused)
        pl.BlockSpec((iters, 1, hidden), lambda b: (0, 0, 0)),         # bu
        pl.BlockSpec((iters, hidden, hidden), lambda b: (0, 0, 0)),    # wa
    ]

    out = pl.pallas_call(
        kernel,
        out_shape=jax.ShapeDtypeStruct((bs, n, n), jnp.float32),
        grid_spec=pltpu.PrefetchScalarGridSpec(
            num_scalar_prefetch=0,
            grid=(grid,),
            in_specs=in_specs,
            out_specs=pl.BlockSpec((b_tile, n, n), lambda b: (b, 0, 0)),
        ),
        compiler_params=pltpu.CompilerParams(
            dimension_semantics=("parallel",)),
    )(
        x, a0,
        ew0, params["eb0"], ew1, params["eb1"],
        wm, params["bm"], wu, params["bu"], wa,
    )
    return out


# ----------------------------------------------------------------------------
# Deterministic parameter init + example run
# ----------------------------------------------------------------------------
def init_params(key, features, hidden, iters):
    ks = jax.random.split(key, 10)
    s = 0.1
    return dict(
        ew0=s * jax.random.normal(ks[0], (features, hidden), jnp.float32),
        eb0=s * jax.random.normal(ks[1], (1, hidden), jnp.float32),
        ew1=s * jax.random.normal(ks[2], (hidden, hidden), jnp.float32),
        eb1=s * jax.random.normal(ks[3], (1, hidden), jnp.float32),
        wm=s * jax.random.normal(ks[4], (iters, hidden, hidden), jnp.float32),
        bm=s * jax.random.normal(ks[5], (iters, 1, hidden), jnp.float32),
        wuh=s * jax.random.normal(ks[6], (iters, hidden, hidden), jnp.float32),
        wum=s * jax.random.normal(ks[7], (iters, hidden, hidden), jnp.float32),
        bu=s * jax.random.normal(ks[8], (iters, 1, hidden), jnp.float32),
        wa=s * jax.random.normal(ks[9], (iters, hidden, hidden), jnp.float32),
    )


if __name__ == "__main__":
    bs, n_vertices, features, hidden, iters = 2, 16, 4, 32, 3

    key = jax.random.PRNGKey(0)
    k_x, k_p = jax.random.split(key)
    x = jax.random.normal(k_x, (bs, n_vertices, features), jnp.float32)
    params = init_params(k_p, features, hidden, iters)

    A = generator_nmp(x, params)
    A = jax.block_until_ready(A)

    assert A.shape == (bs, n_vertices, n_vertices)
    assert bool(jnp.all(jnp.isfinite(A)))
    print("KERNEL_OK")
</pallas_src>

<mosaic_0001>
module attributes {stable_mosaic.version = 11 : i64} {
  func.func @_generator_nmp_kernel(%arg0: i32, %arg1: memref<1x16x4xf32, #tpu.memory_space<vmem>>, %arg2: memref<16x16xf32, #tpu.memory_space<vmem>>, %arg3: memref<4x32xbf16, #tpu.memory_space<vmem>>, %arg4: memref<1x32xf32, #tpu.memory_space<vmem>>, %arg5: memref<32x32xbf16, #tpu.memory_space<vmem>>, %arg6: memref<1x32xf32, #tpu.memory_space<vmem>>, %arg7: memref<3x32x32xbf16, #tpu.memory_space<vmem>>, %arg8: memref<3x1x32xf32, #tpu.memory_space<vmem>>, %arg9: memref<3x64x32xbf16, #tpu.memory_space<vmem>>, %arg10: memref<3x1x32xf32, #tpu.memory_space<vmem>>, %arg11: memref<3x32x32xbf16, #tpu.memory_space<vmem>>, %arg12: memref<1x16x16xf32, #tpu.memory_space<vmem>>) attributes {dimension_semantics = [#tpu.dimension_semantics<parallel>], iteration_bounds = array<i64: 2>, scalar_prefetch = 0 : i64, scratch_operands = 0 : i64, tpu.core_type = #tpu.core_type<tc>, window_params = [{transform_indices = @transform_0, window_bounds = array<i64: 1, 16, 4>}, {pipeline_mode = #tpu.pipeline_mode<synchronous>, transform_indices = @transform_1, window_bounds = array<i64: 16, 16>}, {pipeline_mode = #tpu.pipeline_mode<synchronous>, transform_indices = @transform_2, window_bounds = array<i64: 4, 32>}, {pipeline_mode = #tpu.pipeline_mode<synchronous>, transform_indices = @transform_3, window_bounds = array<i64: 1, 32>}, {pipeline_mode = #tpu.pipeline_mode<synchronous>, transform_indices = @transform_4, window_bounds = array<i64: 32, 32>}, {pipeline_mode = #tpu.pipeline_mode<synchronous>, transform_indices = @transform_5, window_bounds = array<i64: 1, 32>}, {pipeline_mode = #tpu.pipeline_mode<synchronous>, transform_indices = @transform_6, window_bounds = array<i64: 3, 32, 32>}, {pipeline_mode = #tpu.pipeline_mode<synchronous>, transform_indices = @transform_7, window_bounds = array<i64: 3, 1, 32>}, {pipeline_mode = #tpu.pipeline_mode<synchronous>, transform_indices = @transform_8, window_bounds = array<i64: 3, 64, 32>}, {pipeline_mode = #tpu.pipeline_mode<synchronous>, transform_indices = @transform_9, window_bounds = array<i64: 3, 1, 32>}, {pipeline_mode = #tpu.pipeline_mode<synchronous>, transform_indices = @transform_10, window_bounds = array<i64: 3, 32, 32>}, {transform_indices = @transform_11, window_bounds = array<i64: 1, 16, 16>}]} {
    %c0 = arith.constant 0 : index
    %c0_0 = arith.constant 0 : index
    %c0_1 = arith.constant 0 : index
    %0 = vector.load %arg1[%c0, %c0_0, %c0_1] : memref<1x16x4xf32, #tpu.memory_space<vmem>>, vector<1x16x4xf32>
    %1 = vector.shape_cast %0 : vector<1x16x4xf32> to vector<16x4xf32>
    %2 = arith.truncf %1 : vector<16x4xf32> to vector<16x4xbf16>
    %c0_2 = arith.constant 0 : index
    %c0_3 = arith.constant 0 : index
    %3 = vector.load %arg3[%c0_2, %c0_3] : memref<4x32xbf16, #tpu.memory_space<vmem>>, vector<4x32xbf16>
    %cst = arith.constant dense<0.000000e+00> : vector<16x32xf32>
    %4 = tpu.matmul %2, %3, %cst {dimension_numbers = #tpu.dot_dimension_numbers<[1], [0], [0], [1], [0, 0, 1, 1], [], []>} : vector<16x4xbf16>, vector<4x32xbf16>, vector<16x32xf32> -> vector<16x32xf32>
    %c0_4 = arith.constant 0 : index
    %c0_5 = arith.constant 0 : index
    %5 = vector.load %arg4[%c0_4, %c0_5] : memref<1x32xf32, #tpu.memory_space<vmem>>, vector<1x32xf32>
    %6 = vector.broadcast %5 : vector<1x32xf32> to vector<16x32xf32>
    %7 = arith.addf %4, %6 : vector<16x32xf32>
    %cst_6 = arith.constant 0.000000e+00 : f32
    %8 = vector.broadcast %cst_6 : f32 to vector<16x32xf32>
    %9 = arith.maximumf %7, %8 : vector<16x32xf32>
    %10 = arith.truncf %9 : vector<16x32xf32> to vector<16x32xbf16>
    %c0_7 = arith.constant 0 : index
    %c0_8 = arith.constant 0 : index
    %11 = vector.load %arg5[%c0_7, %c0_8] : memref<32x32xbf16, #tpu.memory_space<vmem>>, vector<32x32xbf16>
    %cst_9 = arith.constant dense<0.000000e+00> : vector<16x32xf32>
    %12 = tpu.matmul %10, %11, %cst_9 {dimension_numbers = #tpu.dot_dimension_numbers<[1], [0], [0], [1], [0, 0, 1, 1], [], []>} : vector<16x32xbf16>, vector<32x32xbf16>, vector<16x32xf32> -> vector<16x32xf32>
    %c0_10 = arith.constant 0 : index
    %c0_11 = arith.constant 0 : index
    %13 = vector.load %arg6[%c0_10, %c0_11] : memref<1x32xf32, #tpu.memory_space<vmem>>, vector<1x32xf32>
    %14 = vector.broadcast %13 : vector<1x32xf32> to vector<16x32xf32>
    %15 = arith.addf %12, %14 : vector<16x32xf32>
    %cst_12 = arith.constant 0.000000e+00 : f32
    %16 = vector.broadcast %cst_12 : f32 to vector<16x32xf32>
    %17 = arith.maximumf %15, %16 : vector<16x32xf32>
    %c0_13 = arith.constant 0 : index
    %c0_14 = arith.constant 0 : index
    %18 = vector.load %arg2[%c0_13, %c0_14] : memref<16x16xf32, #tpu.memory_space<vmem>>, vector<16x16xf32>
    %19 = vector.shape_cast %18 : vector<16x16xf32> to vector<1x16x16xf32>
    %20 = arith.truncf %17 : vector<16x32xf32> to vector<16x32xbf16>
    %c0_15 = arith.constant 0 : index
    %c0_16 = arith.constant 0 : index
    %c0_17 = arith.constant 0 : index
    %21 = vector.load %arg7[%c0_15, %c0_16, %c0_17] : memref<3x32x32xbf16, #tpu.memory_space<vmem>>, vector<1x32x32xbf16>
    %22 = vector.shape_cast %21 : vector<1x32x32xbf16> to vector<32x32xbf16>
    %cst_18 = arith.constant dense<0.000000e+00> : vector<16x32xf32>
    %23 = tpu.matmul %20, %22, %cst_18 {dimension_numbers = #tpu.dot_dimension_numbers<[1], [0], [0], [1], [0, 0, 1, 1], [], []>} : vector<16x32xbf16>, vector<32x32xbf16>, vector<16x32xf32> -> vector<16x32xf32>
    %c0_19 = arith.constant 0 : index
    %c0_20 = arith.constant 0 : index
    %c0_21 = arith.constant 0 : index
    %24 = vector.load %arg8[%c0_19, %c0_20, %c0_21] : memref<3x1x32xf32, #tpu.memory_space<vmem>>, vector<1x1x32xf32>
    %25 = vector.shape_cast %24 : vector<1x1x32xf32> to vector<1x32xf32>
    %26 = vector.broadcast %25 : vector<1x32xf32> to vector<16x32xf32>
    %27 = arith.addf %23, %26 : vector<16x32xf32>
    %28 = arith.truncf %19 : vector<1x16x16xf32> to vector<1x16x16xbf16>
    %29 = vector.shape_cast %27 : vector<16x32xf32> to vector<1x16x32xf32>
    %30 = arith.truncf %29 : vector<1x16x32xf32> to vector<1x16x32xbf16>
    "tpu.trace_start"() <{level = 10 : i32, message = "bij,bjk->bik"}> : () -> ()
    %cst_22 = arith.constant dense<0.000000e+00> : vector<1x16x32xf32>
    %31 = tpu.matmul %28, %30, %cst_22 {dimension_numbers = #tpu.dot_dimension_numbers<[2], [1], [1], [2], [0, 0, 0, 1, 1, 2], [0], [0]>} : vector<1x16x16xbf16>, vector<1x16x32xbf16>, vector<1x16x32xf32> -> vector<1x16x32xf32>
    "tpu.trace_stop"() : () -> ()
    %32 = vector.shape_cast %31 : vector<1x16x32xf32> to vector<16x32xf32>
    %33 = tpu.concatenate %17, %32 in 1 : vector<16x32xf32>, vector<16x32xf32> -> vector<16x64xf32>
    %34 = arith.truncf %33 : vector<16x64xf32> to vector<16x64xbf16>
    %c0_23 = arith.constant 0 : index
    %c0_24 = arith.constant 0 : index
    %c0_25 = arith.constant 0 : index
    %35 = vector.load %arg9[%c0_23, %c0_24, %c0_25] : memref<3x64x32xbf16, #tpu.memory_space<vmem>>, vector<1x64x32xbf16>
    %36 = vector.shape_cast %35 : vector<1x64x32xbf16> to vector<64x32xbf16>
    %cst_26 = arith.constant dense<0.000000e+00> : vector<16x32xf32>
    %37 = tpu.matmul %34, %36, %cst_26 {dimension_numbers = #tpu.dot_dimension_numbers<[1], [0], [0], [1], [0, 0, 1, 1], [], []>} : vector<16x64xbf16>, vector<64x32xbf16>, vector<16x32xf32> -> vector<16x32xf32>
    %c0_27 = arith.constant 0 : index
    %c0_28 = arith.constant 0 : index
    %c0_29 = arith.constant 0 : index
    %38 = vector.load %arg10[%c0_27, %c0_28, %c0_29] : memref<3x1x32xf32, #tpu.memory_space<vmem>>, vector<1x1x32xf32>
    %39 = vector.shape_cast %38 : vector<1x1x32xf32> to vector<1x32xf32>
    %40 = vector.broadcast %39 : vector<1x32xf32> to vector<16x32xf32>
    %41 = arith.addf %37, %40 : vector<16x32xf32>
    %42 = math.tanh %41 : vector<16x32xf32>
    %43 = arith.truncf %42 : vector<16x32xf32> to vector<16x32xbf16>
    %c0_30 = arith.constant 0 : index
    %c0_31 = arith.constant 0 : index
    %c0_32 = arith.constant 0 : index
    %44 = vector.load %arg11[%c0_30, %c0_31, %c0_32] : memref<3x32x32xbf16, #tpu.memory_space<vmem>>, vector<1x32x32xbf16>
    %45 = vector.shape_cast %44 : vector<1x32x32xbf16> to vector<32x32xbf16>
    %cst_33 = arith.constant dense<0.000000e+00> : vector<16x32xf32>
    %46 = tpu.matmul %43, %45, %cst_33 {dimension_numbers = #tpu.dot_dimension_numbers<[1], [0], [0], [1], [0, 0, 1, 1], [], []>} : vector<16x32xbf16>, vector<32x32xbf16>, vector<16x32xf32> -> vector<16x32xf32>
    %47 = vector.shape_cast %46 : vector<16x32xf32> to vector<1x16x32xf32>
    %48 = arith.truncf %47 : vector<1x16x32xf32> to vector<1x16x32xbf16>
    "tpu.trace_start"() <{level = 10 : i32, message = "bik,bjk->bij"}> : () -> ()
    %cst_34 = arith.constant dense<0.000000e+00> : vector<1x16x16xf32>
    %49 = tpu.matmul %48, %48, %cst_34 {dimension_numbers = #tpu.dot_dimension_numbers<[2], [2], [1], [1], [0, 0, 0, 1, 1, 1], [0], [0]>} : vector<1x16x32xbf16>, vector<1x16x32xbf16>, vector<1x16x16xf32> -> vector<1x16x16xf32>
    "tpu.trace_stop"() : () -> ()
    %50 = arith.negf %49 : vector<1x16x16xf32>
    %51 = math.exp %50 : vector<1x16x16xf32>
    %cst_35 = arith.constant 1.000000e+00 : f32
    %52 = vector.broadcast %cst_35 : f32 to vector<1x16x16xf32>
    %53 = arith.addf %52, %51 : vector<1x16x16xf32>
    %54 = arith.divf %52, %53 : vector<1x16x16xf32>
    %55 = arith.truncf %42 : vector<16x32xf32> to vector<16x32xbf16>
    %c1 = arith.constant 1 : index
    %c0_36 = arith.constant 0 : index
    %c0_37 = arith.constant 0 : index
    %56 = vector.load %arg7[%c1, %c0_36, %c0_37] : memref<3x32x32xbf16, #tpu.memory_space<vmem>>, vector<1x32x32xbf16>
    %57 = vector.shape_cast %56 : vector<1x32x32xbf16> to vector<32x32xbf16>
    %cst_38 = arith.constant dense<0.000000e+00> : vector<16x32xf32>
    %58 = tpu.matmul %55, %57, %cst_38 {dimension_numbers = #tpu.dot_dimension_numbers<[1], [0], [0], [1], [0, 0, 1, 1], [], []>} : vector<16x32xbf16>, vector<32x32xbf16>, vector<16x32xf32> -> vector<16x32xf32>
    %c1_39 = arith.constant 1 : index
    %c0_40 = arith.constant 0 : index
    %c0_41 = arith.constant 0 : index
    %59 = vector.load %arg8[%c1_39, %c0_40, %c0_41] : memref<3x1x32xf32, #tpu.memory_space<vmem>>, vector<1x1x32xf32>
    %60 = vector.shape_cast %59 : vector<1x1x32xf32> to vector<1x32xf32>
    %61 = vector.broadcast %60 : vector<1x32xf32> to vector<16x32xf32>
    %62 = arith.addf %58, %61 : vector<16x32xf32>
    %63 = arith.truncf %54 : vector<1x16x16xf32> to vector<1x16x16xbf16>
    %64 = vector.shape_cast %62 : vector<16x32xf32> to vector<1x16x32xf32>
    %65 = arith.truncf %64 : vector<1x16x32xf32> to vector<1x16x32xbf16>
    "tpu.trace_start"() <{level = 10 : i32, message = "bij,bjk->bik"}> : () -> ()
    %cst_42 = arith.constant dense<0.000000e+00> : vector<1x16x32xf32>
    %66 = tpu.matmul %63, %65, %cst_42 {dimension_numbers = #tpu.dot_dimension_numbers<[2], [1], [1], [2], [0, 0, 0, 1, 1, 2], [0], [0]>} : vector<1x16x16xbf16>, vector<1x16x32xbf16>, vector<1x16x32xf32> -> vector<1x16x32xf32>
    "tpu.trace_stop"() : () -> ()
    %67 = vector.shape_cast %66 : vector<1x16x32xf32> to vector<16x32xf32>
    %68 = tpu.concatenate %42, %67 in 1 : vector<16x32xf32>, vector<16x32xf32> -> vector<16x64xf32>
    %69 = arith.truncf %68 : vector<16x64xf32> to vector<16x64xbf16>
    %c1_43 = arith.constant 1 : index
    %c0_44 = arith.constant 0 : index
    %c0_45 = arith.constant 0 : index
    %70 = vector.load %arg9[%c1_43, %c0_44, %c0_45] : memref<3x64x32xbf16, #tpu.memory_space<vmem>>, vector<1x64x32xbf16>
    %71 = vector.shape_cast %70 : vector<1x64x32xbf16> to vector<64x32xbf16>
    %cst_46 = arith.constant dense<0.000000e+00> : vector<16x32xf32>
    %72 = tpu.matmul %69, %71, %cst_46 {dimension_numbers = #tpu.dot_dimension_numbers<[1], [0], [0], [1], [0, 0, 1, 1], [], []>} : vector<16x64xbf16>, vector<64x32xbf16>, vector<16x32xf32> -> vector<16x32xf32>
    %c1_47 = arith.constant 1 : index
    %c0_48 = arith.constant 0 : index
    %c0_49 = arith.constant 0 : index
    %73 = vector.load %arg10[%c1_47, %c0_48, %c0_49] : memref<3x1x32xf32, #tpu.memory_space<vmem>>, vector<1x1x32xf32>
    %74 = vector.shape_cast %73 : vector<1x1x32xf32> to vector<1x32xf32>
    %75 = vector.broadcast %74 : vector<1x32xf32> to vector<16x32xf32>
    %76 = arith.addf %72, %75 : vector<16x32xf32>
    %77 = math.tanh %76 : vector<16x32xf32>
    %78 = arith.truncf %77 : vector<16x32xf32> to vector<16x32xbf16>
    %c1_50 = arith.constant 1 : index
    %c0_51 = arith.constant 0 : index
    %c0_52 = arith.constant 0 : index
    %79 = vector.load %arg11[%c1_50, %c0_51, %c0_52] : memref<3x32x32xbf16, #tpu.memory_space<vmem>>, vector<1x32x32xbf16>
    %80 = vector.shape_cast %79 : vector<1x32x32xbf16> to vector<32x32xbf16>
    %cst_53 = arith.constant dense<0.000000e+00> : vector<16x32xf32>
    %81 = tpu.matmul %78, %80, %cst_53 {dimension_numbers = #tpu.dot_dimension_numbers<[1], [0], [0], [1], [0, 0, 1, 1], [], []>} : vector<16x32xbf16>, vector<32x32xbf16>, vector<16x32xf32> -> vector<16x32xf32>
    %82 = vector.shape_cast %81 : vector<16x32xf32> to vector<1x16x32xf32>
    %83 = arith.truncf %82 : vector<1x16x32xf32> to vector<1x16x32xbf16>
    "tpu.trace_start"() <{level = 10 : i32, message = "bik,bjk->bij"}> : () -> ()
    %cst_54 = arith.constant dense<0.000000e+00> : vector<1x16x16xf32>
    %84 = tpu.matmul %83, %83, %cst_54 {dimension_numbers = #tpu.dot_dimension_numbers<[2], [2], [1], [1], [0, 0, 0, 1, 1, 1], [0], [0]>} : vector<1x16x32xbf16>, vector<1x16x32xbf16>, vector<1x16x16xf32> -> vector<1x16x16xf32>
    "tpu.trace_stop"() : () -> ()
    %85 = arith.negf %84 : vector<1x16x16xf32>
    %86 = math.exp %85 : vector<1x16x16xf32>
    %cst_55 = arith.constant 1.000000e+00 : f32
    %87 = vector.broadcast %cst_55 : f32 to vector<1x16x16xf32>
    %88 = arith.addf %87, %86 : vector<1x16x16xf32>
    %89 = arith.divf %87, %88 : vector<1x16x16xf32>
    %90 = arith.truncf %77 : vector<16x32xf32> to vector<16x32xbf16>
    %c2 = arith.constant 2 : index
    %c0_56 = arith.constant 0 : index
    %c0_57 = arith.constant 0 : index
    %91 = vector.load %arg7[%c2, %c0_56, %c0_57] : memref<3x32x32xbf16, #tpu.memory_space<vmem>>, vector<1x32x32xbf16>
    %92 = vector.shape_cast %91 : vector<1x32x32xbf16> to vector<32x32xbf16>
    %cst_58 = arith.constant dense<0.000000e+00> : vector<16x32xf32>
    %93 = tpu.matmul %90, %92, %cst_58 {dimension_numbers = #tpu.dot_dimension_numbers<[1], [0], [0], [1], [0, 0, 1, 1], [], []>} : vector<16x32xbf16>, vector<32x32xbf16>, vector<16x32xf32> -> vector<16x32xf32>
    %c2_59 = arith.constant 2 : index
    %c0_60 = arith.constant 0 : index
    %c0_61 = arith.constant 0 : index
    %94 = vector.load %arg8[%c2_59, %c0_60, %c0_61] : memref<3x1x32xf32, #tpu.memory_space<vmem>>, vector<1x1x32xf32>
    %95 = vector.shape_cast %94 : vector<1x1x32xf32> to vector<1x32xf32>
    %96 = vector.broadcast %95 : vector<1x32xf32> to vector<16x32xf32>
    %97 = arith.addf %93, %96 : vector<16x32xf32>
    %98 = arith.truncf %89 : vector<1x16x16xf32> to vector<1x16x16xbf16>
    %99 = vector.shape_cast %97 : vector<16x32xf32> to vector<1x16x32xf32>
    %100 = arith.truncf %99 : vector<1x16x32xf32> to vector<1x16x32xbf16>
    "tpu.trace_start"() <{level = 10 : i32, message = "bij,bjk->bik"}> : () -> ()
    %cst_62 = arith.constant dense<0.000000e+00> : vector<1x16x32xf32>
    %101 = tpu.matmul %98, %100, %cst_62 {dimension_numbers = #tpu.dot_dimension_numbers<[2], [1], [1], [2], [0, 0, 0, 1, 1, 2], [0], [0]>} : vector<1x16x16xbf16>, vector<1x16x32xbf16>, vector<1x16x32xf32> -> vector<1x16x32xf32>
    "tpu.trace_stop"() : () -> ()
    %102 = vector.shape_cast %101 : vector<1x16x32xf32> to vector<16x32xf32>
    %103 = tpu.concatenate %77, %102 in 1 : vector<16x32xf32>, vector<16x32xf32> -> vector<16x64xf32>
    %104 = arith.truncf %103 : vector<16x64xf32> to vector<16x64xbf16>
    %c2_63 = arith.constant 2 : index
    %c0_64 = arith.constant 0 : index
    %c0_65 = arith.constant 0 : index
    %105 = vector.load %arg9[%c2_63, %c0_64, %c0_65] : memref<3x64x32xbf16, #tpu.memory_space<vmem>>, vector<1x64x32xbf16>
    %106 = vector.shape_cast %105 : vector<1x64x32xbf16> to vector<64x32xbf16>
    %cst_66 = arith.constant dense<0.000000e+00> : vector<16x32xf32>
    %107 = tpu.matmul %104, %106, %cst_66 {dimension_numbers = #tpu.dot_dimension_numbers<[1], [0], [0], [1], [0, 0, 1, 1], [], []>} : vector<16x64xbf16>, vector<64x32xbf16>, vector<16x32xf32> -> vector<16x32xf32>
    %c2_67 = arith.constant 2 : index
    %c0_68 = arith.constant 0 : index
    %c0_69 = arith.constant 0 : index
    %108 = vector.load %arg10[%c2_67, %c0_68, %c0_69] : memref<3x1x32xf32, #tpu.memory_space<vmem>>, vector<1x1x32xf32>
    %109 = vector.shape_cast %108 : vector<1x1x32xf32> to vector<1x32xf32>
    %110 = vector.broadcast %109 : vector<1x32xf32> to vector<16x32xf32>
    %111 = arith.addf %107, %110 : vector<16x32xf32>
    %112 = math.tanh %111 : vector<16x32xf32>
    %113 = arith.truncf %112 : vector<16x32xf32> to vector<16x32xbf16>
    %c2_70 = arith.constant 2 : index
    %c0_71 = arith.constant 0 : index
    %c0_72 = arith.constant 0 : index
    %114 = vector.load %arg11[%c2_70, %c0_71, %c0_72] : memref<3x32x32xbf16, #tpu.memory_space<vmem>>, vector<1x32x32xbf16>
    %115 = vector.shape_cast %114 : vector<1x32x32xbf16> to vector<32x32xbf16>
    %cst_73 = arith.constant dense<0.000000e+00> : vector<16x32xf32>
    %116 = tpu.matmul %113, %115, %cst_73 {dimension_numbers = #tpu.dot_dimension_numbers<[1], [0], [0], [1], [0, 0, 1, 1], [], []>} : vector<16x32xbf16>, vector<32x32xbf16>, vector<16x32xf32> -> vector<16x32xf32>
    %117 = vector.shape_cast %116 : vector<16x32xf32> to vector<1x16x32xf32>
    %118 = arith.truncf %117 : vector<1x16x32xf32> to vector<1x16x32xbf16>
    "tpu.trace_start"() <{level = 10 : i32, message = "bik,bjk->bij"}> : () -> ()
    %cst_74 = arith.constant dense<0.000000e+00> : vector<1x16x16xf32>
    %119 = tpu.matmul %118, %118, %cst_74 {dimension_numbers = #tpu.dot_dimension_numbers<[2], [2], [1], [1], [0, 0, 0, 1, 1, 1], [0], [0]>} : vector<1x16x32xbf16>, vector<1x16x32xbf16>, vector<1x16x16xf32> -> vector<1x16x16xf32>
    "tpu.trace_stop"() : () -> ()
    %120 = arith.negf %119 : vector<1x16x16xf32>
    %121 = math.exp %120 : vector<1x16x16xf32>
    %cst_75 = arith.constant 1.000000e+00 : f32
    %122 = vector.broadcast %cst_75 : f32 to vector<1x16x16xf32>
    %123 = arith.addf %122, %121 : vector<1x16x16xf32>
    %124 = arith.divf %122, %123 : vector<1x16x16xf32>
    %c0_76 = arith.constant 0 : index
    %c0_77 = arith.constant 0 : index
    %c0_78 = arith.constant 0 : index
    %125 = vector.load %arg12[%c0_76, %c0_77, %c0_78] : memref<1x16x16xf32, #tpu.memory_space<vmem>>, vector<1x16x16xf32>
    tpu.vector_store %arg12[%c0_76, %c0_77, %c0_78], %124 {strides = array<i32>} : memref<1x16x16xf32, #tpu.memory_space<vmem>>, vector<1x16x16xf32>,
    return
  }
  func.func @transform_0(%arg0: i32) -> (i32, i32, i32) {
    %c0_i32 = arith.constant 0 : i32
    %c0_i32_0 = arith.constant 0 : i32
    %c0_i32_1 = arith.constant 0 : i32
    return %arg0, %c0_i32, %c0_i32_0 : i32, i32, i32
  }
  func.func @transform_1(%arg0: i32) -> (i32, i32) {
    %c0_i32 = arith.constant 0 : i32
    %c0_i32_0 = arith.constant 0 : i32
    %c0_i32_1 = arith.constant 0 : i32
    return %c0_i32, %c0_i32_0 : i32, i32
  }
  func.func @transform_2(%arg0: i32) -> (i32, i32) {
    %c0_i32 = arith.constant 0 : i32
    %c0_i32_0 = arith.constant 0 : i32
    %c0_i32_1 = arith.constant 0 : i32
    return %c0_i32, %c0_i32_0 : i32, i32
  }
  func.func @transform_3(%arg0: i32) -> (i32, i32) {
    %c0_i32 = arith.constant 0 : i32
    %c0_i32_0 = arith.constant 0 : i32
    %c0_i32_1 = arith.constant 0 : i32
    return %c0_i32, %c0_i32_0 : i32, i32
  }
  func.func @transform_4(%arg0: i32) -> (i32, i32) {
    %c0_i32 = arith.constant 0 : i32
    %c0_i32_0 = arith.constant 0 : i32
    %c0_i32_1 = arith.constant 0 : i32
    return %c0_i32, %c0_i32_0 : i32, i32
  }
  func.func @transform_5(%arg0: i32) -> (i32, i32) {
    %c0_i32 = arith.constant 0 : i32
    %c0_i32_0 = arith.constant 0 : i32
    %c0_i32_1 = arith.constant 0 : i32
    return %c0_i32, %c0_i32_0 : i32, i32
  }
  func.func @transform_6(%arg0: i32) -> (i32, i32, i32) {
    %c0_i32 = arith.constant 0 : i32
    %c0_i32_0 = arith.constant 0 : i32
    %c0_i32_1 = arith.constant 0 : i32
    %c0_i32_2 = arith.constant 0 : i32
    return %c0_i32, %c0_i32_0, %c0_i32_1 : i32, i32, i32
  }
  func.func @transform_7(%arg0: i32) -> (i32, i32, i32) {
    %c0_i32 = arith.constant 0 : i32
    %c0_i32_0 = arith.constant 0 : i32
    %c0_i32_1 = arith.constant 0 : i32
    %c0_i32_2 = arith.constant 0 : i32
    return %c0_i32, %c0_i32_0, %c0_i32_1 : i32, i32, i32
  }
  func.func @transform_8(%arg0: i32) -> (i32, i32, i32) {
    %c0_i32 = arith.constant 0 : i32
    %c0_i32_0 = arith.constant 0 : i32
    %c0_i32_1 = arith.constant 0 : i32
    %c0_i32_2 = arith.constant 0 : i32
    return %c0_i32, %c0_i32_0, %c0_i32_1 : i32, i32, i32
  }
  func.func @transform_9(%arg0: i32) -> (i32, i32, i32) {
    %c0_i32 = arith.constant 0 : i32
    %c0_i32_0 = arith.constant 0 : i32
    %c0_i32_1 = arith.constant 0 : i32
    %c0_i32_2 = arith.constant 0 : i32
    return %c0_i32, %c0_i32_0, %c0_i32_1 : i32, i32, i32
  }
  func.func @transform_10(%arg0: i32) -> (i32, i32, i32) {
    %c0_i32 = arith.constant 0 : i32
    %c0_i32_0 = arith.constant 0 : i32
    %c0_i32_1 = arith.constant 0 : i32
    %c0_i32_2 = arith.constant 0 : i32
    return %c0_i32, %c0_i32_0, %c0_i32_1 : i32, i32, i32
  }
  func.func @transform_11(%arg0: i32) -> (i32, i32, i32) {
    %c0_i32 = arith.constant 0 : i32
    %c0_i32_0 = arith.constant 0 : i32
    %c0_i32_1 = arith.constant 0 : i32
    return %arg0, %c0_i32, %c0_i32_0 : i32, i32, i32
  }
}

</mosaic_0001>

<llo_original>
// kernel: tpu_custom_call.1
$region0: #{tpu_custom_call.1}
  #allocation0 [shape = 'u32[]', space=smem, size = 0x4, offset = 0x4, fixed_abs, tag = 'smem constant byte address 0x4 - core index']
  #allocation1 [shape = 'u32[144,128]{1,0:T(1,128)}', space=vmem, size = 0x12000, scoped, tag = 'internal scratch']
  %s0 = inlined_call_operand.vmem [shape: f32[2,16,4], index: 0, kind: input, shape index: {}]
  %s1 = inlined_call_operand.vmem [shape: f32[16,16], index: 1, kind: input, shape index: {}]
  %s2 = inlined_call_operand.vmem [shape: bf16[4,32], index: 2, kind: input, shape index: {}]
  %s3 = inlined_call_operand.vmem [shape: f32[1,32], index: 3, kind: input, shape index: {}]
  %s4 = inlined_call_operand.vmem [shape: bf16[32,32], index: 4, kind: input, shape index: {}]
  %s5 = inlined_call_operand.vmem [shape: f32[1,32], index: 5, kind: input, shape index: {}]
  %s6 = inlined_call_operand.vmem [shape: bf16[3,32,32], index: 6, kind: input, shape index: {}]
  %s7 = inlined_call_operand.vmem [shape: f32[3,1,32], index: 7, kind: input, shape index: {}]
  %s8 = inlined_call_operand.vmem [shape: bf16[3,64,32], index: 8, kind: input, shape index: {}]
  %s9 = inlined_call_operand.vmem [shape: f32[3,1,32], index: 9, kind: input, shape index: {}]
  %s10 = inlined_call_operand.vmem [shape: bf16[3,32,32], index: 10, kind: input, shape index: {}]
  %s11 = inlined_call_operand.hbm [shape: f32[2,16,16], index: 11, kind: output, shape index: {}]
  %s12 = sld [smem:[#allocation0]]
  $region77: #{tpu_custom_call.1} parent=0
    _
  %s14 = ssub.s32 1, %s12
  %s15 = scalar_select 0, %s14, %s12
  $region1: #{tpu_custom_call.1} parent=0
    #allocation2 [shape = 'u8[16384]{0}', space=vmem, size = 0x4000, scoped, tag = 'output window, operand 0']
    #allocation3 [shape = 's32[2]{0}', space=sflag, size = 0x8, scoped, tag = 'scoped memory for tpu_custom_call.1']
    %16 = vsyncpa [#allocation3], 0
    %s17 = scalar_lea.sflag [#allocation3], 1
    %18 = vsyncpa %s17, 0
    loop: start=0, step=1, limit=4
    $region2: #{tpu_custom_call.1} parent=1 // loop_pre_header
      _
    $region3: #{tpu_custom_call.1} parent=1 // loop_header
      %s20 = sphi 0, %s24
      %p21 = scmp.ge.s32.totalorder %s20, 4
      %s30 = sphi 0, %s32
      %s33 = sphi 0, %s30
      %s34 = sphi 0, %s33
      %s50 = sphi 0, %s34
      %s54 = sphi 0, %s54
      %s56 = sphi 0, %s54
      %s57 = sphi 0, %s56
      %s71 = sphi 0, %s57
      %s75 = sphi 0, %s75
      %s77 = sphi 0, %s75
      %s78 = sphi 0, %s77
      %s92 = sphi 0, %s78
      %s96 = sphi 0, %s96
      %s98 = sphi 0, %s96
      %s99 = sphi 0, %s98
      %s113 = sphi 0, %s99
      %s117 = sphi 0, %s117
      %s119 = sphi 0, %s117
      %s120 = sphi 0, %s119
      %s134 = sphi 0, %s120
      %s138 = sphi 0, %s138
      %s140 = sphi 0, %s138
      %s141 = sphi 0, %s140
      %s155 = sphi 0, %s141
      %s159 = sphi 0, %s159
      %s161 = sphi 0, %s159
      %s162 = sphi 0, %s161
      %s176 = sphi 0, %s162
      %s180 = sphi 0, %s180
      %s182 = sphi 0, %s180
      %s183 = sphi 0, %s182
      %s197 = sphi 0, %s183
      %s201 = sphi 0, %s201
      %s203 = sphi 0, %s201
      %s204 = sphi 0, %s203
      %s218 = sphi 0, %s204
      %s222 = sphi 0, %s222
      %s224 = sphi 0, %s222
      %s225 = sphi 0, %s224
      %s239 = sphi 0, %s225
      %s243 = sphi 0, %s243
      %s245 = sphi 0, %s243
      %s246 = sphi 0, %s245
      %s260 = sphi 0, %s246
      %s266 = sphi 0, %s268
      %s269 = sphi 0, %s266
      %s270 = sphi 0, %s269
      %s286 = sphi 0, %s270
    $region4: #{tpu_custom_call.1} parent=1 // loop_header_branch
      %23 = sbr.rel (%p21) target = $region8
    $region5: #{tpu_custom_call.1} parent=1 // loop_body
      %s25 = ssub.s32 %s20, 1
      %s26 = ssub.s32 %s20, 2
      %s27 = sadd.s32 %s20, 1
      %s28 = ssub.s32 %s20, %s27
      %p29 = scmp.eq.s32.totalorder %s28, 0
      %s31 = sadd.s32 %s30, 1
      %s32 = scalar_select %p29, %s30, %s31
      %p35 = pneg %p29
      %p36 = scmp.eq.s32.totalorder %s20, 1
      %p37 = por %p35, %p36
      %p38 = scmp.ne.s32.totalorder %s30, %s33
      %p39 = scmp.eq.s32.totalorder %s20, 0
      %p40 = por %p38, %p39
      %p41 = scmp.ne.s32.totalorder %s30, %s33
      %p42 = scmp.eq.s32.totalorder %s25, 1
      %p43 = por %p41, %p42
      %p44 = scmp.ne.s32.totalorder %s33, %s34
      %p45 = scmp.eq.s32.totalorder %s25, 0
      %p46 = por %p44, %p45
      %p47 = scmp.ne.s32.totalorder %s33, %s34
      %p48 = scmp.eq.s32.totalorder %s26, 1
      %p49 = por %p47, %p48
      %p51 = scmp.ne.s32.totalorder %s34, %s50
      %p52 = scmp.eq.s32.totalorder %s26, 0
      %p53 = por %p51, %p52
      %s55 = sadd.s32 %s54, 1
      %p58 = scmp.eq.s32.totalorder %s20, 1
      %p59 = scmp.ne.s32.totalorder %s54, %s56
      %p60 = scmp.eq.s32.totalorder %s20, 0
      %p61 = por %p59, %p60
      %p62 = scmp.ne.s32.totalorder %s54, %s56
      %p63 = scmp.eq.s32.totalorder %s25, 1
      %p64 = por %p62, %p63
      %p65 = scmp.ne.s32.totalorder %s56, %s57
      %p66 = scmp.eq.s32.totalorder %s25, 0
      %p67 = por %p65, %p66
      %p68 = scmp.ne.s32.totalorder %s56, %s57
      %p69 = scmp.eq.s32.totalorder %s26, 1
      %p70 = por %p68, %p69
      %p72 = scmp.ne.s32.totalorder %s57, %s71
      %p73 = scmp.eq.s32.totalorder %s26, 0
      %p74 = por %p72, %p73
      %s76 = sadd.s32 %s75, 1
      %p79 = scmp.eq.s32.totalorder %s20, 1
      %p80 = scmp.ne.s32.totalorder %s75, %s77
      %p81 = scmp.eq.s32.totalorder %s20, 0
      %p82 = por %p80, %p81
      %p83 = scmp.ne.s32.totalorder %s75, %s77
      %p84 = scmp.eq.s32.totalorder %s25, 1
      %p85 = por %p83, %p84
      %p86 = scmp.ne.s32.totalorder %s77, %s78
      %p87 = scmp.eq.s32.totalorder %s25, 0
      %p88 = por %p86, %p87
      %p89 = scmp.ne.s32.totalorder %s77, %s78
      %p90 = scmp.eq.s32.totalorder %s26, 1
      %p91 = por %p89, %p90
      %p93 = scmp.ne.s32.totalorder %s78, %s92
      %p94 = scmp.eq.s32.totalorder %s26, 0
      %p95 = por %p93, %p94
      %s97 = sadd.s32 %s96, 1
      %p100 = scmp.eq.s32.totalorder %s20, 1
      %p101 = scmp.ne.s32.totalorder %s96, %s98
      %p102 = scmp.eq.s32.totalorder %s20, 0
      %p103 = por %p101, %p102
      %p104 = scmp.ne.s32.totalorder %s96, %s98
      %p105 = scmp.eq.s32.totalorder %s25, 1
      %p106 = por %p104, %p105
      %p107 = scmp.ne.s32.totalorder %s98, %s99
      %p108 = scmp.eq.s32.totalorder %s25, 0
      %p109 = por %p107, %p108
      %p110 = scmp.ne.s32.totalorder %s98, %s99
      %p111 = scmp.eq.s32.totalorder %s26, 1
      %p112 = por %p110, %p111
      %p114 = scmp.ne.s32.totalorder %s99, %s113
      %p115 = scmp.eq.s32.totalorder %s26, 0
      %p116 = por %p114, %p115
      %s118 = sadd.s32 %s117, 1
      %p121 = scmp.eq.s32.totalorder %s20, 1
      %p122 = scmp.ne.s32.totalorder %s117, %s119
      %p123 = scmp.eq.s32.totalorder %s20, 0
      %p124 = por %p122, %p123
      %p125 = scmp.ne.s32.totalorder %s117, %s119
      %p126 = scmp.eq.s32.totalorder %s25, 1
      %p127 = por %p125, %p126
      %p128 = scmp.ne.s32.totalorder %s119, %s120
      %p129 = scmp.eq.s32.totalorder %s25, 0
      %p130 = por %p128, %p129
      %p131 = scmp.ne.s32.totalorder %s119, %s120
      %p132 = scmp.eq.s32.totalorder %s26, 1
      %p133 = por %p131, %p132
      %p135 = scmp.ne.s32.totalorder %s120, %s134
      %p136 = scmp.eq.s32.totalorder %s26, 0
      %p137 = por %p135, %p136
      %s139 = sadd.s32 %s138, 1
      %p142 = scmp.eq.s32.totalorder %s20, 1
      %p143 = scmp.ne.s32.totalorder %s138, %s140
      %p144 = scmp.eq.s32.totalorder %s20, 0
      %p145 = por %p143, %p144
      %p146 = scmp.ne.s32.totalorder %s138, %s140
      %p147 = scmp.eq.s32.totalorder %s25, 1
      %p148 = por %p146, %p147
      %p149 = scmp.ne.s32.totalorder %s140, %s141
      %p150 = scmp.eq.s32.totalorder %s25, 0
      %p151 = por %p149, %p150
      %p152 = scmp.ne.s32.totalorder %s140, %s141
      %p153 = scmp.eq.s32.totalorder %s26, 1
      %p154 = por %p152, %p153
      %p156 = scmp.ne.s32.totalorder %s141, %s155
      %p157 = scmp.eq.s32.totalorder %s26, 0
      %p158 = por %p156, %p157
      %s160 = sadd.s32 %s159, 1
      %p163 = scmp.eq.s32.totalorder %s20, 1
      %p164 = scmp.ne.s32.totalorder %s159, %s161
      %p165 = scmp.eq.s32.totalorder %s20, 0
      %p166 = por %p164, %p165
      %p167 = scmp.ne.s32.totalorder %s159, %s161
      %p168 = scmp.eq.s32.totalorder %s25, 1
      %p169 = por %p167, %p168
      %p170 = scmp.ne.s32.totalorder %s161, %s162
      %p171 = scmp.eq.s32.totalorder %s25, 0
      %p172 = por %p170, %p171
      %p173 = scmp.ne.s32.totalorder %s161, %s162
      %p174 = scmp.eq.s32.totalorder %s26, 1
      %p175 = por %p173, %p174
      %p177 = scmp.ne.s32.totalorder %s162, %s176
      %p178 = scmp.eq.s32.totalorder %s26, 0
      %p179 = por %p177, %p178
      %s181 = sadd.s32 %s180, 1
      %p184 = scmp.eq.s32.totalorder %s20, 1
      %p185 = scmp.ne.s32.totalorder %s180, %s182
      %p186 = scmp.eq.s32.totalorder %s20, 0
      %p187 = por %p185, %p186
      %p188 = scmp.ne.s32.totalorder %s180, %s182
      %p189 = scmp.eq.s32.totalorder %s25, 1
      %p190 = por %p188, %p189
      %p191 = scmp.ne.s32.totalorder %s182, %s183
      %p192 = scmp.eq.s32.totalorder %s25, 0
      %p193 = por %p191, %p192
      %p194 = scmp.ne.s32.totalorder %s182, %s183
      %p195 = scmp.eq.s32.totalorder %s26, 1
      %p196 = por %p194, %p195
      %p198 = scmp.ne.s32.totalorder %s183, %s197
      %p199 = scmp.eq.s32.totalorder %s26, 0
      %p200 = por %p198, %p199
      %s202 = sadd.s32 %s201, 1
      %p205 = scmp.eq.s32.totalorder %s20, 1
      %p206 = scmp.ne.s32.totalorder %s201, %s203
      %p207 = scmp.eq.s32.totalorder %s20, 0
      %p208 = por %p206, %p207
      %p209 = scmp.ne.s32.totalorder %s201, %s203
      %p210 = scmp.eq.s32.totalorder %s25, 1
      %p211 = por %p209, %p210
      %p212 = scmp.ne.s32.totalorder %s203, %s204
      %p213 = scmp.eq.s32.totalorder %s25, 0
      %p214 = por %p212, %p213
      %p215 = scmp.ne.s32.totalorder %s203, %s204
      %p216 = scmp.eq.s32.totalorder %s26, 1
      %p217 = por %p215, %p216
      %p219 = scmp.ne.s32.totalorder %s204, %s218
      %p220 = scmp.eq.s32.totalorder %s26, 0
      %p221 = por %p219, %p220
      %s223 = sadd.s32 %s222, 1
      %p226 = scmp.eq.s32.totalorder %s20, 1
      %p227 = scmp.ne.s32.totalorder %s222, %s224
      %p228 = scmp.eq.s32.totalorder %s20, 0
      %p229 = por %p227, %p228
      %p230 = scmp.ne.s32.totalorder %s222, %s224
      %p231 = scmp.eq.s32.totalorder %s25, 1
      %p232 = por %p230, %p231
      %p233 = scmp.ne.s32.totalorder %s224, %s225
      %p234 = scmp.eq.s32.totalorder %s25, 0
      %p235 = por %p233, %p234
      %p236 = scmp.ne.s32.totalorder %s224, %s225
      %p237 = scmp.eq.s32.totalorder %s26, 1
      %p238 = por %p236, %p237
      %p240 = scmp.ne.s32.totalorder %s225, %s239
      %p241 = scmp.eq.s32.totalorder %s26, 0
      %p242 = por %p240, %p241
      %s244 = sadd.s32 %s243, 1
      %p247 = scmp.eq.s32.totalorder %s20, 1
      %p248 = scmp.ne.s32.totalorder %s243, %s245
      %p249 = scmp.eq.s32.totalorder %s20, 0
      %p250 = por %p248, %p249
      %p251 = scmp.ne.s32.totalorder %s243, %s245
      %p252 = scmp.eq.s32.totalorder %s25, 1
      %p253 = por %p251, %p252
      %p254 = scmp.ne.s32.totalorder %s245, %s246
      %p255 = scmp.eq.s32.totalorder %s25, 0
      %p256 = por %p254, %p255
      %p257 = scmp.ne.s32.totalorder %s245, %s246
      %p258 = scmp.eq.s32.totalorder %s26, 1
      %p259 = por %p257, %p258
      %p261 = scmp.ne.s32.totalorder %s246, %s260
      %p262 = scmp.eq.s32.totalorder %s26, 0
      %p263 = por %p261, %p262
      %s264 = ssub.s32 %s20, %s27
      %p265 = scmp.eq.s32.totalorder %s264, 0
      %s267 = sadd.s32 %s266, 1
      %s268 = scalar_select %p265, %s266, %s267
      %p271 = pneg %p265
      %p272 = scmp.eq.s32.totalorder %s20, 1
      %p273 = por %p271, %p272
      %p274 = scmp.ne.s32.totalorder %s266, %s269
      %p275 = scmp.eq.s32.totalorder %s20, 0
      %p276 = por %p274, %p275
      %p277 = scmp.ne.s32.totalorder %s266, %s269
      %p278 = scmp.eq.s32.totalorder %s25, 1
      %p279 = por %p277, %p278
      %p280 = scmp.ne.s32.totalorder %s269, %s270
      %p281 = scmp.eq.s32.totalorder %s25, 0
      %p282 = por %p280, %p281
      %p283 = scmp.ne.s32.totalorder %s269, %s270
      %p284 = scmp.eq.s32.totalorder %s26, 1
      %p285 = por %p283, %p284
      %p287 = scmp.ne.s32.totalorder %s270, %s286
      %p288 = scmp.eq.s32.totalorder %s26, 0
      %p289 = por %p287, %p288
      %p290 = scmp.le.s32.totalorder 1, %s20
      %p291 = scmp.lt.s32.totalorder %s20, 3
      %p292 = pnand %p290, %p291
      %p293 = pneg %p292
      // Predicated region
      $region9: #{tpu_custom_call.1} parent=5 // pred_check
        _
      $region10: #{tpu_custom_call.1} parent=5 // pred_check_branch
        %295 = sbr.rel (%p292) target = $region12
      $region11: #{tpu_custom_call.1} parent=5 // pred_region
        %s296 = ssub.s32 %s20, 1
        // Predicated region
        $region13: #{tpu_custom_call.1} parent=11 // pred_check
          %p297 = pneg %p67
        $region14: #{tpu_custom_call.1} parent=11 // pred_check_branch
          %299 = sbr.rel (%p297) target = $region16
        $region15: #{tpu_custom_call.1} parent=11 // pred_region
          _
        $region16: #{tpu_custom_call.1} parent=11 // pred_fallthru
          _
        // Predicated region
        $region17: #{tpu_custom_call.1} parent=11 // pred_check
          %p300 = pneg %p88
        $region18: #{tpu_custom_call.1} parent=11 // pred_check_branch
          %302 = sbr.rel (%p300) target = $region20
        $region19: #{tpu_custom_call.1} parent=11 // pred_region
          _
        $region20: #{tpu_custom_call.1} parent=11 // pred_fallthru
          _
        // Predicated region
        $region21: #{tpu_custom_call.1} parent=11 // pred_check
          %p303 = pneg %p109
        $region22: #{tpu_custom_call.1} parent=11 // pred_check_branch
          %305 = sbr.rel (%p303) target = $region24
        $region23: #{tpu_custom_call.1} parent=11 // pred_region
          _
        $region24: #{tpu_custom_call.1} parent=11 // pred_fallthru
          _
        // Predicated region
        $region25: #{tpu_custom_call.1} parent=11 // pred_check
          %p306 = pneg %p130
        $region26: #{tpu_custom_call.1} parent=11 // pred_check_branch
          %308 = sbr.rel (%p306) target = $region28
        $region27: #{tpu_custom_call.1} parent=11 // pred_region
          _
        $region28: #{tpu_custom_call.1} parent=11 // pred_fallthru
          _
        // Predicated region
        $region29: #{tpu_custom_call.1} parent=11 // pred_check
          %p309 = pneg %p151
        $region30: #{tpu_custom_call.1} parent=11 // pred_check_branch
          %311 = sbr.rel (%p309) target = $region32
        $region31: #{tpu_custom_call.1} parent=11 // pred_region
          _
        $region32: #{tpu_custom_call.1} parent=11 // pred_fallthru
          _
        // Predicated region
        $region33: #{tpu_custom_call.1} parent=11 // pred_check
          %p312 = pneg %p172
        $region34: #{tpu_custom_call.1} parent=11 // pred_check_branch
          %314 = sbr.rel (%p312) target = $region36
        $region35: #{tpu_custom_call.1} parent=11 // pred_region
          _
        $region36: #{tpu_custom_call.1} parent=11 // pred_fallthru
          _
        // Predicated region
        $region37: #{tpu_custom_call.1} parent=11 // pred_check
          %p315 = pneg %p193
        $region38: #{tpu_custom_call.1} parent=11 // pred_check_branch
          %317 = sbr.rel (%p315) target = $region40
        $region39: #{tpu_custom_call.1} parent=11 // pred_region
          _
        $region40: #{tpu_custom_call.1} parent=11 // pred_fallthru
          _
        // Predicated region
        $region41: #{tpu_custom_call.1} parent=11 // pred_check
          %p318 = pneg %p214
        $region42: #{tpu_custom_call.1} parent=11 // pred_check_branch
          %320 = sbr.rel (%p318) target = $region44
        $region43: #{tpu_custom_call.1} parent=11 // pred_region
          _
        $region44: #{tpu_custom_call.1} parent=11 // pred_fallthru
          _
        // Predicated region
        $region45: #{tpu_custom_call.1} parent=11 // pred_check
          %p321 = pneg %p235
        $region46: #{tpu_custom_call.1} parent=11 // pred_check_branch
          %323 = sbr.rel (%p321) target = $region48
        $region47: #{tpu_custom_call.1} parent=11 // pred_region
          _
        $region48: #{tpu_custom_call.1} parent=11 // pred_fallthru
          _
        // Predicated region
        $region49: #{tpu_custom_call.1} parent=11 // pred_check
          %p324 = pneg %p256
        $region50: #{tpu_custom_call.1} parent=11 // pred_check_branch
          %326 = sbr.rel (%p324) target = $region52
        $region51: #{tpu_custom_call.1} parent=11 // pred_region
          _
        $region52: #{tpu_custom_call.1} parent=11 // pred_fallthru
          _
      $region12: #{tpu_custom_call.1} parent=5 // pred_fallthru
        _
      %p327 = scmp.lt.s32.totalorder %s20, 2
      // Predicated region
      $region53: #{tpu_custom_call.1} parent=5 // pred_check
        %p328 = pneg %p327
      $region54: #{tpu_custom_call.1} parent=5 // pred_check_branch
        %330 = sbr.rel (%p328) target = $region56
      $region55: #{tpu_custom_call.1} parent=5 // pred_region
        // Predicated region
        $region57: #{tpu_custom_call.1} parent=55 // pred_check
          %p331 = pneg %p40
        $region58: #{tpu_custom_call.1} parent=55 // pred_check_branch
          %333 = sbr.rel (%p331) target = $region60
        $region59: #{tpu_custom_call.1} parent=55 // pred_region
          %p334 = scmp.lt.s32.totalorder %s20, 1
          %s335 = scalar_select %p334, %s20, 1
          %s336 = smul.addr %s335, 2
          %s337 = smul.addr %s336, 8
          %s338 = scalar_lea.vmem %s0, %s337
        $region60: #{tpu_custom_call.1} parent=55 // pred_fallthru
          _
      $region56: #{tpu_custom_call.1} parent=5 // pred_fallthru
        _
      %p339 = scmp.le.s32.totalorder 1, %s20
      %p340 = scmp.lt.s32.totalorder %s20, 3
      %p341 = pnand %p339, %p340
      %p342 = pneg %p341
      // Predicated region
      $region61: #{tpu_custom_call.1} parent=5 // pred_check
        _
      $region62: #{tpu_custom_call.1} parent=5 // pred_check_branch
        %344 = sbr.rel (%p341) target = $region64
      $region63: #{tpu_custom_call.1} parent=5 // pred_region
        %s345 = ssub.s32 %s20, 1
        %p346 = scmp.lt.s32.totalorder %s25, 1
        %s347 = scalar_select %p346, %s25, 1
        %s348 = smul.addr %s347, 2
        %s349 = smul.addr %s348, 8
        %s350 = scalar_lea.vmem %s0, %s349
        %p351 = pneg %p46
        %p352 = pneg %p43
        %p353 = pneg %p67
        %p354 = pneg %p64
        %p355 = pneg %p88
        %p356 = pneg %p85
        %p357 = pneg %p109
        %p358 = pneg %p106
        %p359 = pneg %p130
        %p360 = pneg %p127
        %p361 = pneg %p151
        %p362 = pneg %p148
        %p363 = pneg %p172
        %p364 = pneg %p169
        %p365 = pneg %p193
        %p366 = pneg %p190
        %p367 = pneg %p214
        %p368 = pneg %p211
        %p369 = pneg %p235
        %p370 = pneg %p232
        %p371 = pneg %p256
        %p372 = pneg %p253
        %p373 = pneg %p282
        %p374 = pneg %p279
        %s375 = sand.u32 %s269, 1
        %s376 = scalar_lea.sflag [#allocation3], %s375
        %s377 = sand.u32 %s269, 1
        %s378 = smul.addr %s377, 16
        %s379 = scalar_lea.vmem [#allocation2], %s378
        %p380 = scmp.lt.s32.totalorder %s25, 1
        %s381 = scalar_select %p380, %s25, 1
        %s382 = smul.addr %s381, 2
        %s383 = smul.addr %s382, 8
        %s384 = scalar_lea.vmem %s0, %s383
        %v386 = vld [vmem:[%s384] sm:$0xff]
        %v387 = vld [vmem:[%s384 + $0x8] sm:$0xff]
        %v388 = vpack.c.bf16 %v387, %v386
        %v389 = vld [vmem:[%s2] sm:$0x3]
        %v390 = vld [vmem:[%s3] sm:$0x1]
        %v392 = vlaneseq
        %v393 = vshrl.u32 %v392, 7
        %v394 = vsub.s32 0, %v393
        %v395 = vrot.slane %v390, %v394
        %vm397 = vcmask 31744
        %v399 = vsel %vm397, %v388, 0
        %vm401 = vcmask 1041408
        %v403 = vsel %vm401, %v389, 0
        %405 = vmatprep.subr.bf16.mxu0 0
        %406 = vmatpush1.bf16.msra.mxu0 %v403
        %407 = vmatprep.subr.bf16.mxu0 0
        %408 = vmatpush1.bf16.msra.mxu0 0
        %409 = vmatprep.subr.bf16.mxu0 0
        %410 = vmatpush1.bf16.msra.mxu0 0
        %411 = vmatprep.subr.bf16.mxu0 0
        %412 = vmatpush1.bf16.msra.mxu0 0
        %413 = vmatprep.subr.bf16.mxu0 0
        %414 = vmatpush1.bf16.msra.mxu0 0
        %415 = vmatprep.subr.bf16.mxu0 0
        %416 = vmatpush1.bf16.msra.mxu0 0
        %417 = vmatprep.subr.bf16.mxu0 0
        %418 = vmatpush1.bf16.msra.mxu0 0
        %419 = vmatprep.subr.bf16.mxu0 0
        %420 = vmatpush1.bf16.msra.mxu0 0
        %421 = vmatprep.subr.bf16.mxu0 0
        %422 = vmatpush1.bf16.msra.mxu0 0
        %423 = vmatprep.subr.bf16.mxu0 0
        %424 = vmatpush1.bf16.msra.mxu0 0
        %425 = vmatprep.subr.bf16.mxu0 0
        %426 = vmatpush1.bf16.msra.mxu0 0
        %427 = vmatprep.subr.bf16.mxu0 0
        %428 = vmatpush1.bf16.msra.mxu0 0
        %429 = vmatprep.subr.bf16.mxu0 0
        %430 = vmatpush1.bf16.msra.mxu0 0
        %431 = vmatprep.subr.bf16.mxu0 0
        %432 = vmatpush1.bf16.msra.mxu0 0
        %433 = vmatprep.subr.bf16.mxu0 0
        %434 = vmatpush1.bf16.msra.mxu0 0
        %435 = vmatprep.subr.bf16.mxu0 0
        %436 = vmatpush1.bf16.msra.mxu0 0
        %437 = vmatprep.mubr.bf16.mxu0 0
        %438 = vmatmul.mubr.bf16.gmra.mrb[0].mxu0 %v399
        %v439 = vpop.f32.mrb[0].mxu0
        %v440 = vadd.f32 %v395, %v439
        %v441 = vpop.f32.mrb[0].mxu0
        %v442 = vpop.f32.mrb[0].mxu0
        %v443 = vadd.f32 %v395, %v442
        %v444 = vpop.f32.mrb[0].mxu0
        %445 = vdwg.mxu0
        %v446 = vmax.f32 %v440, 0.0
        %v447 = vmax.f32 %v443, 0.0
        %v448 = vpack.c.bf16 %v447, %v446
        %v449 = vld [vmem:[%s4] sm:$0xf]
        %v450 = vld [vmem:[%s4 + $0x4] sm:$0xf]
        %v451 = vld [vmem:[%s4 + $0x8] sm:$0xf]
        %v452 = vld [vmem:[%s4 + $0xc] sm:$0xf]
        %v453 = vld [vmem:[%s5] sm:$0x1]
        %v455 = vlaneseq
        %v456 = vshrl.u32 %v455, 7
        %v457 = vsub.s32 0, %v456
        %v458 = vrot.slane %v453, %v457
        %v464 = vunpack.c.l.b16 %v449
        %v465 = vunpack.c.l.b16 %v450
        %v466 = vunpack.c.l.b16 %v451
        %v467 = vunpack.c.l.b16 %v452
        %v468 = vpack.c.b16 %v465, %v464
        %v469 = vpack.c.b16 %v467, %v466
        %vm472 = vcmask 261120
        %v474 = vsel %vm472, %v448, 0
        %476 = vmatprep.subr.bf16.mxu0 0
        %477 = vmatpush1.bf16.msra.mxu0 %v468
        %478 = vmatprep.subr.bf16.mxu0 0
        %479 = vmatpush1.bf16.msra.mxu0 %v469
        %480 = vmatprep.subr.bf16.mxu0 0
        %481 = vmatpush1.bf16.msra.mxu0 0
        %482 = vmatprep.subr.bf16.mxu0 0
        %483 = vmatpush1.bf16.msra.mxu0 0
        %484 = vmatprep.subr.bf16.mxu0 0
        %485 = vmatpush1.bf16.msra.mxu0 0
        %486 = vmatprep.subr.bf16.mxu0 0
        %487 = vmatpush1.bf16.msra.mxu0 0
        %488 = vmatprep.subr.bf16.mxu0 0
        %489 = vmatpush1.bf16.msra.mxu0 0
        %490 = vmatprep.subr.bf16.mxu0 0
        %491 = vmatpush1.bf16.msra.mxu0 0
        %492 = vmatprep.subr.bf16.mxu0 0
        %493 = vmatpush1.bf16.msra.mxu0 0
        %494 = vmatprep.subr.bf16.mxu0 0
        %495 = vmatpush1.bf16.msra.mxu0 0
        %496 = vmatprep.subr.bf16.mxu0 0
        %497 = vmatpush1.bf16.msra.mxu0 0
        %498 = vmatprep.subr.bf16.mxu0 0
        %499 = vmatpush1.bf16.msra.mxu0 0
        %500 = vmatprep.subr.bf16.mxu0 0
        %501 = vmatpush1.bf16.msra.mxu0 0
        %502 = vmatprep.subr.bf16.mxu0 0
        %503 = vmatpush1.bf16.msra.mxu0 0
        %504 = vmatprep.subr.bf16.mxu0 0
        %505 = vmatpush1.bf16.msra.mxu0 0
        %506 = vmatprep.subr.bf16.mxu0 0
        %507 = vmatpush1.bf16.msra.mxu0 0
        %508 = vmatprep.mubr.bf16.mxu0 0
        %509 = vmatmul.mubr.bf16.gmra.mrb[0].mxu0 %v474
        %v510 = vpop.f32.mrb[0].mxu0
        %v511 = vadd.f32 %v458, %v510
        %v512 = vpop.f32.mrb[0].mxu0
        %v513 = vpop.f32.mrb[0].mxu0
        %v514 = vadd.f32 %v458, %v513
        %v515 = vpop.f32.mrb[0].mxu0
        %516 = vdwg.mxu0
        %v517 = vmax.f32 %v511, 0.0
        %v518 = vmax.f32 %v514, 0.0
        %v519 = vld [vmem:[%s1] sm:$0xff]
        %v520 = vld [vmem:[%s1 + $0x8] sm:$0xff]
        %v521 = vpack.c.bf16 %v518, %v517
        %v522 = vld [vmem:[%s6] sm:$0xf]
        %v523 = vld [vmem:[%s6 + $0x4] sm:$0xf]
        %v524 = vld [vmem:[%s6 + $0x8] sm:$0xf]
        %v525 = vld [vmem:[%s6 + $0xc] sm:$0xf]
        %v526 = vld [vmem:[%s7] sm:$0x1]
        %v528 = vlaneseq
        %v529 = vshrl.u32 %v528, 7
        %v530 = vsub.s32 0, %v529
        %v531 = vrot.slane %v526, %v530
        %v537 = vunpack.c.l.b16 %v522
        %v538 = vunpack.c.l.b16 %v523
        %v539 = vunpack.c.l.b16 %v524
        %v540 = vunpack.c.l.b16 %v525
        %v541 = vpack.c.b16 %v538, %v537
        %v542 = vpack.c.b16 %v540, %v539
        %v546 = vsel %vm472, %v521, 0
        %548 = vmatprep.subr.bf16.mxu0 0
        %549 = vmatpush1.bf16.msra.mxu0 %v541
        %550 = vmatprep.subr.bf16.mxu0 0
        %551 = vmatpush1.bf16.msra.mxu0 %v542
        %552 = vmatprep.subr.bf16.mxu0 0
        %553 = vmatpush1.bf16.msra.mxu0 0
        %554 = vmatprep.subr.bf16.mxu0 0
        %555 = vmatpush1.bf16.msra.mxu0 0
        %556 = vmatprep.subr.bf16.mxu0 0
        %557 = vmatpush1.bf16.msra.mxu0 0
        %558 = vmatprep.subr.bf16.mxu0 0
        %559 = vmatpush1.bf16.msra.mxu0 0
        %560 = vmatprep.subr.bf16.mxu0 0
        %561 = vmatpush1.bf16.msra.mxu0 0
        %562 = vmatprep.subr.bf16.mxu0 0
        %563 = vmatpush1.bf16.msra.mxu0 0
        %564 = vmatprep.subr.bf16.mxu0 0
        %565 = vmatpush1.bf16.msra.mxu0 0
        %566 = vmatprep.subr.bf16.mxu0 0
        %567 = vmatpush1.bf16.msra.mxu0 0
        %568 = vmatprep.subr.bf16.mxu0 0
        %569 = vmatpush1.bf16.msra.mxu0 0
        %570 = vmatprep.subr.bf16.mxu0 0
        %571 = vmatpush1.bf16.msra.mxu0 0
        %572 = vmatprep.subr.bf16.mxu0 0
        %573 = vmatpush1.bf16.msra.mxu0 0
        %574 = vmatprep.subr.bf16.mxu0 0
        %575 = vmatpush1.bf16.msra.mxu0 0
        %576 = vmatprep.subr.bf16.mxu0 0
        %577 = vmatpush1.bf16.msra.mxu0 0
        %578 = vmatprep.subr.bf16.mxu0 0
        %579 = vmatpush1.bf16.msra.mxu0 0
        %580 = vmatprep.mubr.bf16.mxu0 0
        %581 = vmatmul.mubr.bf16.gmra.mrb[0].mxu0 %v546
        %v582 = vpop.f32.mrb[0].mxu0
        %v583 = vadd.f32 %v531, %v582
        %v584 = vpop.f32.mrb[0].mxu0
        %v585 = vpop.f32.mrb[0].mxu0
        %v586 = vadd.f32 %v531, %v585
        %v587 = vpop.f32.mrb[0].mxu0
        %588 = vdwg.mxu0
        %v589 = vpack.c.bf16 %v520, %v519
        %v590 = vpack.c.bf16 %v586, %v583
        %vm591 = vcmask 130048
        %v593 = vsel %vm591, %v589, 0
        %595 = vmatprep.subr.bf16.mxu0 0
        %596 = vmatpush1.bf16.msra.mxu0 %v590
        %597 = vmatprep.subr.bf16.mxu0 0
        %598 = vmatpush1.bf16.msra.mxu0 0
        %599 = vmatprep.subr.bf16.mxu0 0
        %600 = vmatpush1.bf16.msra.mxu0 0
        %601 = vmatprep.subr.bf16.mxu0 0
        %602 = vmatpush1.bf16.msra.mxu0 0
        %603 = vmatprep.subr.bf16.mxu0 0
        %604 = vmatpush1.bf16.msra.mxu0 0
        %605 = vmatprep.subr.bf16.mxu0 0
        %606 = vmatpush1.bf16.msra.mxu0 0
        %607 = vmatprep.subr.bf16.mxu0 0
        %608 = vmatpush1.bf16.msra.mxu0 0
        %609 = vmatprep.subr.bf16.mxu0 0
        %610 = vmatpush1.bf16.msra.mxu0 0
        %611 = vmatprep.subr.bf16.mxu0 0
        %612 = vmatpush1.bf16.msra.mxu0 0
        %613 = vmatprep.subr.bf16.mxu0 0
        %614 = vmatpush1.bf16.msra.mxu0 0
        %615 = vmatprep.subr.bf16.mxu0 0
        %616 = vmatpush1.bf16.msra.mxu0 0
        %617 = vmatprep.subr.bf16.mxu0 0
        %618 = vmatpush1.bf16.msra.mxu0 0
        %619 = vmatprep.subr.bf16.mxu0 0
        %620 = vmatpush1.bf16.msra.mxu0 0
        %621 = vmatprep.subr.bf16.mxu0 0
        %622 = vmatpush1.bf16.msra.mxu0 0
        %623 = vmatprep.subr.bf16.mxu0 0
        %624 = vmatpush1.bf16.msra.mxu0 0
        %625 = vmatprep.subr.bf16.mxu0 0
        %626 = vmatpush1.bf16.msra.mxu0 0
        %627 = vmatprep.mubr.bf16.mxu0 0
        %628 = vmatmul.mubr.bf16.gmra.mrb[0].mxu0 %v593
        %v629 = vpop.f32.mrb[0].mxu0
        %v630 = vadd.f32 0.0, %v629
        %v631 = vpop.f32.mrb[0].mxu0
        %v632 = vpop.f32.mrb[0].mxu0
        %v633 = vadd.f32 0.0, %v632
        %v634 = vpop.f32.mrb[0].mxu0
        %635 = vdwg.mxu0
        %638 = vrot.lane.b32.xlu0 %v630, 32
        %v639 = vpop.permute.xlu0 %638
        %640 = vrot.lane.b32.xlu0 %v633, 32
        %v641 = vpop.permute.xlu0 %640
        %v644 = vsel %vm472, %v517, %v639
        %v645 = vsel %vm472, %v518, %v641
        %v646 = vpack.c.bf16 %v645, %v644
        %v647 = vld [vmem:[%s8] sm:$0xf]
        %v648 = vld [vmem:[%s8 + $0x4] sm:$0xf]
        %v649 = vld [vmem:[%s8 + $0x8] sm:$0xf]
        %v650 = vld [vmem:[%s8 + $0xc] sm:$0xf]
        %v651 = vld [vmem:[%s8 + $0x10] sm:$0xf]
        %v652 = vld [vmem:[%s8 + $0x14] sm:$0xf]
        %v653 = vld [vmem:[%s8 + $0x18] sm:$0xf]
        %v654 = vld [vmem:[%s8 + $0x1c] sm:$0xf]
        %v655 = vld [vmem:[%s9] sm:$0x1]
        %v657 = vlaneseq
        %v658 = vshrl.u32 %v657, 7
        %v659 = vsub.s32 0, %v658
        %v660 = vrot.slane %v655, %v659
        %v670 = vunpack.c.l.b16 %v647
        %v671 = vunpack.c.l.b16 %v648
        %v672 = vunpack.c.l.b16 %v649
        %v673 = vunpack.c.l.b16 %v650
        %v674 = vunpack.c.l.b16 %v651
        %v675 = vunpack.c.l.b16 %v652
        %v676 = vunpack.c.l.b16 %v653
        %v677 = vunpack.c.l.b16 %v654
        %v678 = vpack.c.b16 %v671, %v670
        %v679 = vpack.c.b16 %v673, %v672
        %v680 = vpack.c.b16 %v675, %v674
        %v681 = vpack.c.b16 %v677, %v676
        %vm686 = vcmask 523264
        %v688 = vsel %vm686, %v646, 0
        %690 = vmatprep.subr.bf16.mxu0 0
        %691 = vmatpush1.bf16.msra.mxu0 %v678
        %692 = vmatprep.subr.bf16.mxu0 0
        %693 = vmatpush1.bf16.msra.mxu0 %v679
        %694 = vmatprep.subr.bf16.mxu0 0
        %695 = vmatpush1.bf16.msra.mxu0 %v680
        %696 = vmatprep.subr.bf16.mxu0 0
        %697 = vmatpush1.bf16.msra.mxu0 %v681
        %698 = vmatprep.subr.bf16.mxu0 0
        %699 = vmatpush1.bf16.msra.mxu0 0
        %700 = vmatprep.subr.bf16.mxu0 0
        %701 = vmatpush1.bf16.msra.mxu0 0
        %702 = vmatprep.subr.bf16.mxu0 0
        %703 = vmatpush1.bf16.msra.mxu0 0
        %704 = vmatprep.subr.bf16.mxu0 0
        %705 = vmatpush1.bf16.msra.mxu0 0
        %706 = vmatprep.subr.bf16.mxu0 0
        %707 = vmatpush1.bf16.msra.mxu0 0
        %708 = vmatprep.subr.bf16.mxu0 0
        %709 = vmatpush1.bf16.msra.mxu0 0
        %710 = vmatprep.subr.bf16.mxu0 0
        %711 = vmatpush1.bf16.msra.mxu0 0
        %712 = vmatprep.subr.bf16.mxu0 0
        %713 = vmatpush1.bf16.msra.mxu0 0
        %714 = vmatprep.subr.bf16.mxu0 0
        %715 = vmatpush1.bf16.msra.mxu0 0
        %716 = vmatprep.subr.bf16.mxu0 0
        %717 = vmatpush1.bf16.msra.mxu0 0
        %718 = vmatprep.subr.bf16.mxu0 0
        %719 = vmatpush1.bf16.msra.mxu0 0
        %720 = vmatprep.subr.bf16.mxu0 0
        %721 = vmatpush1.bf16.msra.mxu0 0
        %722 = vmatprep.mubr.bf16.mxu0 0
        %723 = vmatmul.mubr.bf16.gmra.mrb[0].mxu0 %v688
        %v724 = vpop.f32.mrb[0].mxu0
        %v725 = vadd.f32 %v660, %v724
        %v726 = vpop.f32.mrb[0].mxu0
        %v727 = vpop.f32.mrb[0].mxu0
        %v728 = vadd.f32 %v660, %v727
        %v729 = vpop.f32.mrb[0].mxu0
        %730 = vdwg.mxu0
        %v731 = vtanh.pop %v725
        %v732 = vtanh.pop %v728
        %v733 = vpack.c.bf16 %v732, %v731
        %v734 = vld [vmem:[%s10] sm:$0xf]
        %v735 = vld [vmem:[%s10 + $0x4] sm:$0xf]
        %v736 = vld [vmem:[%s10 + $0x8] sm:$0xf]
        %v737 = vld [vmem:[%s10 + $0xc] sm:$0xf]
        %v742 = vunpack.c.l.b16 %v734
        %v743 = vunpack.c.l.b16 %v735
        %v744 = vunpack.c.l.b16 %v736
        %v745 = vunpack.c.l.b16 %v737
        %v746 = vpack.c.b16 %v743, %v742
        %v747 = vpack.c.b16 %v745, %v744
        %v751 = vsel %vm472, %v733, 0
        %753 = vmatprep.subr.bf16.mxu0 0
        %754 = vmatpush1.bf16.msra.mxu0 %v746
        %755 = vmatprep.subr.bf16.mxu0 0
        %756 = vmatpush1.bf16.msra.mxu0 %v747
        %757 = vmatprep.subr.bf16.mxu0 0
        %758 = vmatpush1.bf16.msra.mxu0 0
        %759 = vmatprep.subr.bf16.mxu0 0
        %760 = vmatpush1.bf16.msra.mxu0 0
        %761 = vmatprep.subr.bf16.mxu0 0
        %762 = vmatpush1.bf16.msra.mxu0 0
        %763 = vmatprep.subr.bf16.mxu0 0
        %764 = vmatpush1.bf16.msra.mxu0 0
        %765 = vmatprep.subr.bf16.mxu0 0
        %766 = vmatpush1.bf16.msra.mxu0 0
        %767 = vmatprep.subr.bf16.mxu0 0
        %768 = vmatpush1.bf16.msra.mxu0 0
        %769 = vmatprep.subr.bf16.mxu0 0
        %770 = vmatpush1.bf16.msra.mxu0 0
        %771 = vmatprep.subr.bf16.mxu0 0
        %772 = vmatpush1.bf16.msra.mxu0 0
        %773 = vmatprep.subr.bf16.mxu0 0
        %774 = vmatpush1.bf16.msra.mxu0 0
        %775 = vmatprep.subr.bf16.mxu0 0
        %776 = vmatpush1.bf16.msra.mxu0 0
        %777 = vmatprep.subr.bf16.mxu0 0
        %778 = vmatpush1.bf16.msra.mxu0 0
        %779 = vmatprep.subr.bf16.mxu0 0
        %780 = vmatpush1.bf16.msra.mxu0 0
        %781 = vmatprep.subr.bf16.mxu0 0
        %782 = vmatpush1.bf16.msra.mxu0 0
        %783 = vmatprep.subr.bf16.mxu0 0
        %784 = vmatpush1.bf16.msra.mxu0 0
        %785 = vmatprep.mubr.bf16.mxu0 0
        %786 = vmatmul.mubr.bf16.gmra.mrb[0].mxu0 %v751
        %v787 = vpop.f32.mrb[0].mxu0
        %v788 = vadd.f32 0.0, %v787
        %v789 = vpop.f32.mrb[0].mxu0
        %v790 = vpop.f32.mrb[0].mxu0
        %v791 = vadd.f32 0.0, %v790
        %v792 = vpop.f32.mrb[0].mxu0
        %793 = vdwg.mxu0
        %v794 = vpack.c.bf16 %v791, %v788
        %v796 = vsel %vm472, %v794, 0
        %798 = vmatprep.subr.bf16.mxu0 0
        %799 = vmatpush1.bf16.xpose.msra.mxu0 %v796
        %800 = vmatprep.subr.bf16.mxu0 0
        %801 = vmatpush1.bf16.xpose.msra.mxu0 0
        %802 = vmatprep.subr.bf16.mxu0 0
        %803 = vmatpush1.bf16.xpose.msra.mxu0 0
        %804 = vmatprep.subr.bf16.mxu0 0
        %805 = vmatpush1.bf16.xpose.msra.mxu0 0
        %806 = vmatprep.subr.bf16.mxu0 0
        %807 = vmatpush1.bf16.xpose.msra.mxu0 0
        %808 = vmatprep.subr.bf16.mxu0 0
        %809 = vmatpush1.bf16.xpose.msra.mxu0 0
        %810 = vmatprep.subr.bf16.mxu0 0
        %811 = vmatpush1.bf16.xpose.msra.mxu0 0
        %812 = vmatprep.subr.bf16.mxu0 0
        %813 = vmatpush1.bf16.xpose.msra.mxu0 0
        %814 = vmatprep.subr.bf16.mxu0 0
        %815 = vmatpush1.bf16.xpose.msra.mxu0 0
        %816 = vmatprep.subr.bf16.mxu0 0
        %817 = vmatpush1.bf16.xpose.msra.mxu0 0
        %818 = vmatprep.subr.bf16.mxu0 0
        %819 = vmatpush1.bf16.xpose.msra.mxu0 0
        %820 = vmatprep.subr.bf16.mxu0 0
        %821 = vmatpush1.bf16.xpose.msra.mxu0 0
        %822 = vmatprep.subr.bf16.mxu0 0
        %823 = vmatpush1.bf16.xpose.msra.mxu0 0
        %824 = vmatprep.subr.bf16.mxu0 0
        %825 = vmatpush1.bf16.xpose.msra.mxu0 0
        %826 = vmatprep.subr.bf16.mxu0 0
        %827 = vmatpush1.bf16.xpose.msra.mxu0 0
        %828 = vmatprep.subr.bf16.mxu0 0
        %829 = vmatpush1.bf16.xpose.msra.mxu0 0
        %830 = vmatprep.mubr.bf16.mxu0 0
        %831 = vmatmul.mubr.bf16.gmra.mrb[0].mxu0 %v796
        %v832 = vpop.f32.mrb[0].mxu0
        %v833 = vadd.f32 0.0, %v832
        %v834 = vpop.f32.mrb[0].mxu0
        %v835 = vpop.f32.mrb[0].mxu0
        %v836 = vadd.f32 0.0, %v835
        %v837 = vpop.f32.mrb[0].mxu0
        %838 = vdwg.mxu0
        %v839 = vxor.u32 %v833, 2147483648
        %v840 = vxor.u32 %v836, 2147483648
        %v841 = vmul.f32 %v839, 1.442695
        %v842 = vpow.pop %v841
        %v843 = vmul.f32 %v840, 1.442695
        %v844 = vpow.pop %v843
        %v845 = vadd.f32 %v842, 1.0
        %v846 = vadd.f32 %v844, 1.0
        %v847 = vrcp.pop %v845
        %v848 = vmul.f32 1.0, %v847
        %v849 = vrcp.pop %v846
        %v850 = vmul.f32 1.0, %v849
        %s851 = scalar_lea.vmem %s6, 16
        %v852 = vld [vmem:[%s851] sm:$0xf]
        %v853 = vld [vmem:[%s851 + $0x4] sm:$0xf]
        %v854 = vld [vmem:[%s851 + $0x8] sm:$0xf]
        %v855 = vld [vmem:[%s851 + $0xc] sm:$0xf]
        %s856 = scalar_lea.vmem %s7, 1
        %v857 = vld [vmem:[%s856] sm:$0x1]
        %v859 = vlaneseq
        %v860 = vshrl.u32 %v859, 7
        %v861 = vsub.s32 0, %v860
        %v862 = vrot.slane %v857, %v861
        %v868 = vunpack.c.l.b16 %v852
        %v869 = vunpack.c.l.b16 %v853
        %v870 = vunpack.c.l.b16 %v854
        %v871 = vunpack.c.l.b16 %v855
        %v872 = vpack.c.b16 %v869, %v868
        %v873 = vpack.c.b16 %v871, %v870
        %876 = vmatprep.subr.bf16.mxu0 0
        %877 = vmatpush1.bf16.msra.mxu0 %v872
        %878 = vmatprep.subr.bf16.mxu0 0
        %879 = vmatpush1.bf16.msra.mxu0 %v873
        %880 = vmatprep.subr.bf16.mxu0 0
        %881 = vmatpush1.bf16.msra.mxu0 0
        %882 = vmatprep.subr.bf16.mxu0 0
        %883 = vmatpush1.bf16.msra.mxu0 0
        %884 = vmatprep.subr.bf16.mxu0 0
        %885 = vmatpush1.bf16.msra.mxu0 0
        %886 = vmatprep.subr.bf16.mxu0 0
        %887 = vmatpush1.bf16.msra.mxu0 0
        %888 = vmatprep.subr.bf16.mxu0 0
        %889 = vmatpush1.bf16.msra.mxu0 0
        %890 = vmatprep.subr.bf16.mxu0 0
        %891 = vmatpush1.bf16.msra.mxu0 0
        %892 = vmatprep.subr.bf16.mxu0 0
        %893 = vmatpush1.bf16.msra.mxu0 0
        %894 = vmatprep.subr.bf16.mxu0 0
        %895 = vmatpush1.bf16.msra.mxu0 0
        %896 = vmatprep.subr.bf16.mxu0 0
        %897 = vmatpush1.bf16.msra.mxu0 0
        %898 = vmatprep.subr.bf16.mxu0 0
        %899 = vmatpush1.bf16.msra.mxu0 0
        %900 = vmatprep.subr.bf16.mxu0 0
        %901 = vmatpush1.bf16.msra.mxu0 0
        %902 = vmatprep.subr.bf16.mxu0 0
        %903 = vmatpush1.bf16.msra.mxu0 0
        %904 = vmatprep.subr.bf16.mxu0 0
        %905 = vmatpush1.bf16.msra.mxu0 0
        %906 = vmatprep.subr.bf16.mxu0 0
        %907 = vmatpush1.bf16.msra.mxu0 0
        %908 = vmatprep.mubr.bf16.mxu0 0
        %909 = vmatmul.mubr.bf16.gmra.mrb[0].mxu0 %v751
        %v910 = vpop.f32.mrb[0].mxu0
        %v911 = vadd.f32 %v862, %v910
        %v912 = vpop.f32.mrb[0].mxu0
        %v913 = vpop.f32.mrb[0].mxu0
        %v914 = vadd.f32 %v862, %v913
        %v915 = vpop.f32.mrb[0].mxu0
        %916 = vdwg.mxu0
        %v917 = vpack.c.bf16 %v850, %v848
        %v918 = vpack.c.bf16 %v914, %v911
        %v920 = vsel %vm591, %v917, 0
        %922 = vmatprep.subr.bf16.mxu0 0
        %923 = vmatpush1.bf16.msra.mxu0 %v918
        %924 = vmatprep.subr.bf16.mxu0 0
        %925 = vmatpush1.bf16.msra.mxu0 0
        %926 = vmatprep.subr.bf16.mxu0 0
        %927 = vmatpush1.bf16.msra.mxu0 0
        %928 = vmatprep.subr.bf16.mxu0 0
        %929 = vmatpush1.bf16.msra.mxu0 0
        %930 = vmatprep.subr.bf16.mxu0 0
        %931 = vmatpush1.bf16.msra.mxu0 0
        %932 = vmatprep.subr.bf16.mxu0 0
        %933 = vmatpush1.bf16.msra.mxu0 0
        %934 = vmatprep.subr.bf16.mxu0 0
        %935 = vmatpush1.bf16.msra.mxu0 0
        %936 = vmatprep.subr.bf16.mxu0 0
        %937 = vmatpush1.bf16.msra.mxu0 0
        %938 = vmatprep.subr.bf16.mxu0 0
        %939 = vmatpush1.bf16.msra.mxu0 0
        %940 = vmatprep.subr.bf16.mxu0 0
        %941 = vmatpush1.bf16.msra.mxu0 0
        %942 = vmatprep.subr.bf16.mxu0 0
        %943 = vmatpush1.bf16.msra.mxu0 0
        %944 = vmatprep.subr.bf16.mxu0 0
        %945 = vmatpush1.bf16.msra.mxu0 0
        %946 = vmatprep.subr.bf16.mxu0 0
        %947 = vmatpush1.bf16.msra.mxu0 0
        %948 = vmatprep.subr.bf16.mxu0 0
        %949 = vmatpush1.bf16.msra.mxu0 0
        %950 = vmatprep.subr.bf16.mxu0 0
        %951 = vmatpush1.bf16.msra.mxu0 0
        %952 = vmatprep.subr.bf16.mxu0 0
        %953 = vmatpush1.bf16.msra.mxu0 0
        %954 = vmatprep.mubr.bf16.mxu0 0
        %955 = vmatmul.mubr.bf16.gmra.mrb[0].mxu0 %v920
        %v956 = vpop.f32.mrb[0].mxu0
        %v957 = vadd.f32 0.0, %v956
        %v958 = vpop.f32.mrb[0].mxu0
        %v959 = vpop.f32.mrb[0].mxu0
        %v960 = vadd.f32 0.0, %v959
        %v961 = vpop.f32.mrb[0].mxu0
        %962 = vdwg.mxu0
        %965 = vrot.lane.b32.xlu0 %v957, 32
        %v966 = vpop.permute.xlu0 %965
        %967 = vrot.lane.b32.xlu0 %v960, 32
        %v968 = vpop.permute.xlu0 %967
        %v971 = vsel %vm472, %v731, %v966
        %v972 = vsel %vm472, %v732, %v968
        %v973 = vpack.c.bf16 %v972, %v971
        %s974 = scalar_lea.vmem %s8, 32
        %v975 = vld [vmem:[%s974] sm:$0xf]
        %v976 = vld [vmem:[%s974 + $0x4] sm:$0xf]
        %v977 = vld [vmem:[%s974 + $0x8] sm:$0xf]
        %v978 = vld [vmem:[%s974 + $0xc] sm:$0xf]
        %v979 = vld [vmem:[%s974 + $0x10] sm:$0xf]
        %v980 = vld [vmem:[%s974 + $0x14] sm:$0xf]
        %v981 = vld [vmem:[%s974 + $0x18] sm:$0xf]
        %v982 = vld [vmem:[%s974 + $0x1c] sm:$0xf]
        %s983 = scalar_lea.vmem %s9, 1
        %v984 = vld [vmem:[%s983] sm:$0x1]
        %v986 = vlaneseq
        %v987 = vshrl.u32 %v986, 7
        %v988 = vsub.s32 0, %v987
        %v989 = vrot.slane %v984, %v988
        %v999 = vunpack.c.l.b16 %v975
        %v1000 = vunpack.c.l.b16 %v976
        %v1001 = vunpack.c.l.b16 %v977
        %v1002 = vunpack.c.l.b16 %v978
        %v1003 = vunpack.c.l.b16 %v979
        %v1004 = vunpack.c.l.b16 %v980
        %v1005 = vunpack.c.l.b16 %v981
        %v1006 = vunpack.c.l.b16 %v982
        %v1007 = vpack.c.b16 %v1000, %v999
        %v1008 = vpack.c.b16 %v1002, %v1001
        %v1009 = vpack.c.b16 %v1004, %v1003
        %v1010 = vpack.c.b16 %v1006, %v1005
        %v1016 = vsel %vm686, %v973, 0
        %1018 = vmatprep.subr.bf16.mxu0 0
        %1019 = vmatpush1.bf16.msra.mxu0 %v1007
        %1020 = vmatprep.subr.bf16.mxu0 0
        %1021 = vmatpush1.bf16.msra.mxu0 %v1008
        %1022 = vmatprep.subr.bf16.mxu0 0
        %1023 = vmatpush1.bf16.msra.mxu0 %v1009
        %1024 = vmatprep.subr.bf16.mxu0 0
        %1025 = vmatpush1.bf16.msra.mxu0 %v1010
        %1026 = vmatprep.subr.bf16.mxu0 0
        %1027 = vmatpush1.bf16.msra.mxu0 0
        %1028 = vmatprep.subr.bf16.mxu0 0
        %1029 = vmatpush1.bf16.msra.mxu0 0
        %1030 = vmatprep.subr.bf16.mxu0 0
        %1031 = vmatpush1.bf16.msra.mxu0 0
        %1032 = vmatprep.subr.bf16.mxu0 0
        %1033 = vmatpush1.bf16.msra.mxu0 0
        %1034 = vmatprep.subr.bf16.mxu0 0
        %1035 = vmatpush1.bf16.msra.mxu0 0
        %1036 = vmatprep.subr.bf16.mxu0 0
        %1037 = vmatpush1.bf16.msra.mxu0 0
        %1038 = vmatprep.subr.bf16.mxu0 0
        %1039 = vmatpush1.bf16.msra.mxu0 0
        %1040 = vmatprep.subr.bf16.mxu0 0
        %1041 = vmatpush1.bf16.msra.mxu0 0
        %1042 = vmatprep.subr.bf16.mxu0 0
        %1043 = vmatpush1.bf16.msra.mxu0 0
        %1044 = vmatprep.subr.bf16.mxu0 0
        %1045 = vmatpush1.bf16.msra.mxu0 0
        %1046 = vmatprep.subr.bf16.mxu0 0
        %1047 = vmatpush1.bf16.msra.mxu0 0
        %1048 = vmatprep.subr.bf16.mxu0 0
        %1049 = vmatpush1.bf16.msra.mxu0 0
        %1050 = vmatprep.mubr.bf16.mxu0 0
        %1051 = vmatmul.mubr.bf16.gmra.mrb[0].mxu0 %v1016
        %v1052 = vpop.f32.mrb[0].mxu0
        %v1053 = vadd.f32 %v989, %v1052
        %v1054 = vpop.f32.mrb[0].mxu0
        %v1055 = vpop.f32.mrb[0].mxu0
        %v1056 = vadd.f32 %v989, %v1055
        %v1057 = vpop.f32.mrb[0].mxu0
        %1058 = vdwg.mxu0
        %v1059 = vtanh.pop %v1053
        %v1060 = vtanh.pop %v1056
        %v1061 = vpack.c.bf16 %v1060, %v1059
        %s1062 = scalar_lea.vmem %s10, 16
        %v1063 = vld [vmem:[%s1062] sm:$0xf]
        %v1064 = vld [vmem:[%s1062 + $0x4] sm:$0xf]
        %v1065 = vld [vmem:[%s1062 + $0x8] sm:$0xf]
        %v1066 = vld [vmem:[%s1062 + $0xc] sm:$0xf]
        %v1071 = vunpack.c.l.b16 %v1063
        %v1072 = vunpack.c.l.b16 %v1064
        %v1073 = vunpack.c.l.b16 %v1065
        %v1074 = vunpack.c.l.b16 %v1066
        %v1075 = vpack.c.b16 %v1072, %v1071
        %v1076 = vpack.c.b16 %v1074, %v1073
        %v1080 = vsel %vm472, %v1061, 0
        %1082 = vmatprep.subr.bf16.mxu0 0
        %1083 = vmatpush1.bf16.msra.mxu0 %v1075
        %1084 = vmatprep.subr.bf16.mxu0 0
        %1085 = vmatpush1.bf16.msra.mxu0 %v1076
        %1086 = vmatprep.subr.bf16.mxu0 0
        %1087 = vmatpush1.bf16.msra.mxu0 0
        %1088 = vmatprep.subr.bf16.mxu0 0
        %1089 = vmatpush1.bf16.msra.mxu0 0
        %1090 = vmatprep.subr.bf16.mxu0 0
        %1091 = vmatpush1.bf16.msra.mxu0 0
        %1092 = vmatprep.subr.bf16.mxu0 0
        %1093 = vmatpush1.bf16.msra.mxu0 0
        %1094 = vmatprep.subr.bf16.mxu0 0
        %1095 = vmatpush1.bf16.msra.mxu0 0
        %1096 = vmatprep.subr.bf16.mxu0 0
        %1097 = vmatpush1.bf16.msra.mxu0 0
        %1098 = vmatprep.subr.bf16.mxu0 0
        %1099 = vmatpush1.bf16.msra.mxu0 0
        %1100 = vmatprep.subr.bf16.mxu0 0
        %1101 = vmatpush1.bf16.msra.mxu0 0
        %1102 = vmatprep.subr.bf16.mxu0 0
        %1103 = vmatpush1.bf16.msra.mxu0 0
        %1104 = vmatprep.subr.bf16.mxu0 0
        %1105 = vmatpush1.bf16.msra.mxu0 0
        %1106 = vmatprep.subr.bf16.mxu0 0
        %1107 = vmatpush1.bf16.msra.mxu0 0
        %1108 = vmatprep.subr.bf16.mxu0 0
        %1109 = vmatpush1.bf16.msra.mxu0 0
        %1110 = vmatprep.subr.bf16.mxu0 0
        %1111 = vmatpush1.bf16.msra.mxu0 0
        %1112 = vmatprep.subr.bf16.mxu0 0
        %1113 = vmatpush1.bf16.msra.mxu0 0
        %1114 = vmatprep.mubr.bf16.mxu0 0
        %1115 = vmatmul.mubr.bf16.gmra.mrb[0].mxu0 %v1080
        %v1116 = vpop.f32.mrb[0].mxu0
        %v1117 = vadd.f32 0.0, %v1116
        %v1118 = vpop.f32.mrb[0].mxu0
        %v1119 = vpop.f32.mrb[0].mxu0
        %v1120 = vadd.f32 0.0, %v1119
        %v1121 = vpop.f32.mrb[0].mxu0
        %1122 = vdwg.mxu0
        %v1123 = vpack.c.bf16 %v1120, %v1117
        %v1125 = vsel %vm472, %v1123, 0
        %1127 = vmatprep.subr.bf16.mxu0 0
        %1128 = vmatpush1.bf16.xpose.msra.mxu0 %v1125
        %1129 = vmatprep.subr.bf16.mxu0 0
        %1130 = vmatpush1.bf16.xpose.msra.mxu0 0
        %1131 = vmatprep.subr.bf16.mxu0 0
        %1132 = vmatpush1.bf16.xpose.msra.mxu0 0
        %1133 = vmatprep.subr.bf16.mxu0 0
        %1134 = vmatpush1.bf16.xpose.msra.mxu0 0
        %1135 = vmatprep.subr.bf16.mxu0 0
        %1136 = vmatpush1.bf16.xpose.msra.mxu0 0
        %1137 = vmatprep.subr.bf16.mxu0 0
        %1138 = vmatpush1.bf16.xpose.msra.mxu0 0
        %1139 = vmatprep.subr.bf16.mxu0 0
        %1140 = vmatpush1.bf16.xpose.msra.mxu0 0
        %1141 = vmatprep.subr.bf16.mxu0 0
        %1142 = vmatpush1.bf16.xpose.msra.mxu0 0
        %1143 = vmatprep.subr.bf16.mxu0 0
        %1144 = vmatpush1.bf16.xpose.msra.mxu0 0
        %1145 = vmatprep.subr.bf16.mxu0 0
        %1146 = vmatpush1.bf16.xpose.msra.mxu0 0
        %1147 = vmatprep.subr.bf16.mxu0 0
        %1148 = vmatpush1.bf16.xpose.msra.mxu0 0
        %1149 = vmatprep.subr.bf16.mxu0 0
        %1150 = vmatpush1.bf16.xpose.msra.mxu0 0
        %1151 = vmatprep.subr.bf16.mxu0 0
        %1152 = vmatpush1.bf16.xpose.msra.mxu0 0
        %1153 = vmatprep.subr.bf16.mxu0 0
        %1154 = vmatpush1.bf16.xpose.msra.mxu0 0
        %1155 = vmatprep.subr.bf16.mxu0 0
        %1156 = vmatpush1.bf16.xpose.msra.mxu0 0
        %1157 = vmatprep.subr.bf16.mxu0 0
        %1158 = vmatpush1.bf16.xpose.msra.mxu0 0
        %1159 = vmatprep.mubr.bf16.mxu0 0
        %1160 = vmatmul.mubr.bf16.gmra.mrb[0].mxu0 %v1125
        %v1161 = vpop.f32.mrb[0].mxu0
        %v1162 = vadd.f32 0.0, %v1161
        %v1163 = vpop.f32.mrb[0].mxu0
        %v1164 = vpop.f32.mrb[0].mxu0
        %v1165 = vadd.f32 0.0, %v1164
        %v1166 = vpop.f32.mrb[0].mxu0
        %1167 = vdwg.mxu0
        %v1168 = vxor.u32 %v1162, 2147483648
        %v1169 = vxor.u32 %v1165, 2147483648
        %v1170 = vmul.f32 %v1168, 1.442695
        %v1171 = vpow.pop %v1170
        %v1172 = vmul.f32 %v1169, 1.442695
        %v1173 = vpow.pop %v1172
        %v1174 = vadd.f32 %v1171, 1.0
        %v1175 = vadd.f32 %v1173, 1.0
        %v1176 = vrcp.pop %v1174
        %v1177 = vmul.f32 1.0, %v1176
        %v1178 = vrcp.pop %v1175
        %v1179 = vmul.f32 1.0, %v1178
        %s1180 = scalar_lea.vmem %s6, 32
        %v1181 = vld [vmem:[%s1180] sm:$0xf]
        %v1182 = vld [vmem:[%s1180 + $0x4] sm:$0xf]
        %v1183 = vld [vmem:[%s1180 + $0x8] sm:$0xf]
        %v1184 = vld [vmem:[%s1180 + $0xc] sm:$0xf]
        %s1185 = scalar_lea.vmem %s7, 2
        %v1186 = vld [vmem:[%s1185] sm:$0x1]
        %v1188 = vlaneseq
        %v1189 = vshrl.u32 %v1188, 7
        %v1190 = vsub.s32 0, %v1189
        %v1191 = vrot.slane %v1186, %v1190
        %v1197 = vunpack.c.l.b16 %v1181
        %v1198 = vunpack.c.l.b16 %v1182
        %v1199 = vunpack.c.l.b16 %v1183
        %v1200 = vunpack.c.l.b16 %v1184
        %v1201 = vpack.c.b16 %v1198, %v1197
        %v1202 = vpack.c.b16 %v1200, %v1199
        %1205 = vmatprep.subr.bf16.mxu0 0
        %1206 = vmatpush1.bf16.msra.mxu0 %v1201
        %1207 = vmatprep.subr.bf16.mxu0 0
        %1208 = vmatpush1.bf16.msra.mxu0 %v1202
        %1209 = vmatprep.subr.bf16.mxu0 0
        %1210 = vmatpush1.bf16.msra.mxu0 0
        %1211 = vmatprep.subr.bf16.mxu0 0
        %1212 = vmatpush1.bf16.msra.mxu0 0
        %1213 = vmatprep.subr.bf16.mxu0 0
        %1214 = vmatpush1.bf16.msra.mxu0 0
        %1215 = vmatprep.subr.bf16.mxu0 0
        %1216 = vmatpush1.bf16.msra.mxu0 0
        %1217 = vmatprep.subr.bf16.mxu0 0
        %1218 = vmatpush1.bf16.msra.mxu0 0
        %1219 = vmatprep.subr.bf16.mxu0 0
        %1220 = vmatpush1.bf16.msra.mxu0 0
        %1221 = vmatprep.subr.bf16.mxu0 0
        %1222 = vmatpush1.bf16.msra.mxu0 0
        %1223 = vmatprep.subr.bf16.mxu0 0
        %1224 = vmatpush1.bf16.msra.mxu0 0
        %1225 = vmatprep.subr.bf16.mxu0 0
        %1226 = vmatpush1.bf16.msra.mxu0 0
        %1227 = vmatprep.subr.bf16.mxu0 0
        %1228 = vmatpush1.bf16.msra.mxu0 0
        %1229 = vmatprep.subr.bf16.mxu0 0
        %1230 = vmatpush1.bf16.msra.mxu0 0
        %1231 = vmatprep.subr.bf16.mxu0 0
        %1232 = vmatpush1.bf16.msra.mxu0 0
        %1233 = vmatprep.subr.bf16.mxu0 0
        %1234 = vmatpush1.bf16.msra.mxu0 0
        %1235 = vmatprep.subr.bf16.mxu0 0
        %1236 = vmatpush1.bf16.msra.mxu0 0
        %1237 = vmatprep.mubr.bf16.mxu0 0
        %1238 = vmatmul.mubr.bf16.gmra.mrb[0].mxu0 %v1080
        %v1239 = vpop.f32.mrb[0].mxu0
        %v1240 = vadd.f32 %v1191, %v1239
        %v1241 = vpop.f32.mrb[0].mxu0
        %v1242 = vpop.f32.mrb[0].mxu0
        %v1243 = vadd.f32 %v1191, %v1242
        %v1244 = vpop.f32.mrb[0].mxu0
        %1245 = vdwg.mxu0
        %v1246 = vpack.c.bf16 %v1179, %v1177
        %v1247 = vpack.c.bf16 %v1243, %v1240
        %v1249 = vsel %vm591, %v1246, 0
        %1251 = vmatprep.subr.bf16.mxu0 0
        %1252 = vmatpush1.bf16.msra.mxu0 %v1247
        %1253 = vmatprep.subr.bf16.mxu0 0
        %1254 = vmatpush1.bf16.msra.mxu0 0
        %1255 = vmatprep.subr.bf16.mxu0 0
        %1256 = vmatpush1.bf16.msra.mxu0 0
        %1257 = vmatprep.subr.bf16.mxu0 0
        %1258 = vmatpush1.bf16.msra.mxu0 0
        %1259 = vmatprep.subr.bf16.mxu0 0
        %1260 = vmatpush1.bf16.msra.mxu0 0
        %1261 = vmatprep.subr.bf16.mxu0 0
        %1262 = vmatpush1.bf16.msra.mxu0 0
        %1263 = vmatprep.subr.bf16.mxu0 0
        %1264 = vmatpush1.bf16.msra.mxu0 0
        %1265 = vmatprep.subr.bf16.mxu0 0
        %1266 = vmatpush1.bf16.msra.mxu0 0
        %1267 = vmatprep.subr.bf16.mxu0 0
        %1268 = vmatpush1.bf16.msra.mxu0 0
        %1269 = vmatprep.subr.bf16.mxu0 0
        %1270 = vmatpush1.bf16.msra.mxu0 0
        %1271 = vmatprep.subr.bf16.mxu0 0
        %1272 = vmatpush1.bf16.msra.mxu0 0
        %1273 = vmatprep.subr.bf16.mxu0 0
        %1274 = vmatpush1.bf16.msra.mxu0 0
        %1275 = vmatprep.subr.bf16.mxu0 0
        %1276 = vmatpush1.bf16.msra.mxu0 0
        %1277 = vmatprep.subr.bf16.mxu0 0
        %1278 = vmatpush1.bf16.msra.mxu0 0
        %1279 = vmatprep.subr.bf16.mxu0 0
        %1280 = vmatpush1.bf16.msra.mxu0 0
        %1281 = vmatprep.subr.bf16.mxu0 0
        %1282 = vmatpush1.bf16.msra.mxu0 0
        %1283 = vmatprep.mubr.bf16.mxu0 0
        %1284 = vmatmul.mubr.bf16.gmra.mrb[0].mxu0 %v1249
        %v1285 = vpop.f32.mrb[0].mxu0
        %v1286 = vadd.f32 0.0, %v1285
        %v1287 = vpop.f32.mrb[0].mxu0
        %v1288 = vpop.f32.mrb[0].mxu0
        %v1289 = vadd.f32 0.0, %v1288
        %v1290 = vpop.f32.mrb[0].mxu0
        %1291 = vdwg.mxu0
        %1294 = vrot.lane.b32.xlu0 %v1286, 32
        %v1295 = vpop.permute.xlu0 %1294
        %1296 = vrot.lane.b32.xlu0 %v1289, 32
        %v1297 = vpop.permute.xlu0 %1296
        %v1300 = vsel %vm472, %v1059, %v1295
        %v1301 = vsel %vm472, %v1060, %v1297
        %v1302 = vpack.c.bf16 %v1301, %v1300
        %s1303 = scalar_lea.vmem %s8, 64
        %v1304 = vld [vmem:[%s1303] sm:$0xf]
        %v1305 = vld [vmem:[%s1303 + $0x4] sm:$0xf]
        %v1306 = vld [vmem:[%s1303 + $0x8] sm:$0xf]
        %v1307 = vld [vmem:[%s1303 + $0xc] sm:$0xf]
        %v1308 = vld [vmem:[%s1303 + $0x10] sm:$0xf]
        %v1309 = vld [vmem:[%s1303 + $0x14] sm:$0xf]
        %v1310 = vld [vmem:[%s1303 + $0x18] sm:$0xf]
        %v1311 = vld [vmem:[%s1303 + $0x1c] sm:$0xf]
        %s1312 = scalar_lea.vmem %s9, 2
        %v1313 = vld [vmem:[%s1312] sm:$0x1]
        %v1315 = vlaneseq
        %v1316 = vshrl.u32 %v1315, 7
        %v1317 = vsub.s32 0, %v1316
        %v1318 = vrot.slane %v1313, %v1317
        %v1328 = vunpack.c.l.b16 %v1304
        %v1329 = vunpack.c.l.b16 %v1305
        %v1330 = vunpack.c.l.b16 %v1306
        %v1331 = vunpack.c.l.b16 %v1307
        %v1332 = vunpack.c.l.b16 %v1308
        %v1333 = vunpack.c.l.b16 %v1309
        %v1334 = vunpack.c.l.b16 %v1310
        %v1335 = vunpack.c.l.b16 %v1311
        %v1336 = vpack.c.b16 %v1329, %v1328
        %v1337 = vpack.c.b16 %v1331, %v1330
        %v1338 = vpack.c.b16 %v1333, %v1332
        %v1339 = vpack.c.b16 %v1335, %v1334
        %v1345 = vsel %vm686, %v1302, 0
        %1347 = vmatprep.subr.bf16.mxu0 0
        %1348 = vmatpush1.bf16.msra.mxu0 %v1336
        %1349 = vmatprep.subr.bf16.mxu0 0
        %1350 = vmatpush1.bf16.msra.mxu0 %v1337
        %1351 = vmatprep.subr.bf16.mxu0 0
        %1352 = vmatpush1.bf16.msra.mxu0 %v1338
        %1353 = vmatprep.subr.bf16.mxu0 0
        %1354 = vmatpush1.bf16.msra.mxu0 %v1339
        %1355 = vmatprep.subr.bf16.mxu0 0
        %1356 = vmatpush1.bf16.msra.mxu0 0
        %1357 = vmatprep.subr.bf16.mxu0 0
        %1358 = vmatpush1.bf16.msra.mxu0 0
        %1359 = vmatprep.subr.bf16.mxu0 0
        %1360 = vmatpush1.bf16.msra.mxu0 0
        %1361 = vmatprep.subr.bf16.mxu0 0
        %1362 = vmatpush1.bf16.msra.mxu0 0
        %1363 = vmatprep.subr.bf16.mxu0 0
        %1364 = vmatpush1.bf16.msra.mxu0 0
        %1365 = vmatprep.subr.bf16.mxu0 0
        %1366 = vmatpush1.bf16.msra.mxu0 0
        %1367 = vmatprep.subr.bf16.mxu0 0
        %1368 = vmatpush1.bf16.msra.mxu0 0
        %1369 = vmatprep.subr.bf16.mxu0 0
        %1370 = vmatpush1.bf16.msra.mxu0 0
        %1371 = vmatprep.subr.bf16.mxu0 0
        %1372 = vmatpush1.bf16.msra.mxu0 0
        %1373 = vmatprep.subr.bf16.mxu0 0
        %1374 = vmatpush1.bf16.msra.mxu0 0
        %1375 = vmatprep.subr.bf16.mxu0 0
        %1376 = vmatpush1.bf16.msra.mxu0 0
        %1377 = vmatprep.subr.bf16.mxu0 0
        %1378 = vmatpush1.bf16.msra.mxu0 0
        %1379 = vmatprep.mubr.bf16.mxu0 0
        %1380 = vmatmul.mubr.bf16.gmra.mrb[0].mxu0 %v1345
        %v1381 = vpop.f32.mrb[0].mxu0
        %v1382 = vadd.f32 %v1318, %v1381
        %v1383 = vpop.f32.mrb[0].mxu0
        %v1384 = vpop.f32.mrb[0].mxu0
        %v1385 = vadd.f32 %v1318, %v1384
        %v1386 = vpop.f32.mrb[0].mxu0
        %1387 = vdwg.mxu0
        %v1388 = vtanh.pop %v1382
        %v1389 = vtanh.pop %v1385
        %v1390 = vpack.c.bf16 %v1389, %v1388
        %s1391 = scalar_lea.vmem %s10, 32
        %v1392 = vld [vmem:[%s1391] sm:$0xf]
        %v1393 = vld [vmem:[%s1391 + $0x4] sm:$0xf]
        %v1394 = vld [vmem:[%s1391 + $0x8] sm:$0xf]
        %v1395 = vld [vmem:[%s1391 + $0xc] sm:$0xf]
        %v1400 = vunpack.c.l.b16 %v1392
        %v1401 = vunpack.c.l.b16 %v1393
        %v1402 = vunpack.c.l.b16 %v1394
        %v1403 = vunpack.c.l.b16 %v1395
        %v1404 = vpack.c.b16 %v1401, %v1400
        %v1405 = vpack.c.b16 %v1403, %v1402
        %v1409 = vsel %vm472, %v1390, 0
        %1411 = vmatprep.subr.bf16.mxu0 0
        %1412 = vmatpush1.bf16.msra.mxu0 %v1404
        %1413 = vmatprep.subr.bf16.mxu0 0
        %1414 = vmatpush1.bf16.msra.mxu0 %v1405
        %1415 = vmatprep.subr.bf16.mxu0 0
        %1416 = vmatpush1.bf16.msra.mxu0 0
        %1417 = vmatprep.subr.bf16.mxu0 0
        %1418 = vmatpush1.bf16.msra.mxu0 0
        %1419 = vmatprep.subr.bf16.mxu0 0
        %1420 = vmatpush1.bf16.msra.mxu0 0
        %1421 = vmatprep.subr.bf16.mxu0 0
        %1422 = vmatpush1.bf16.msra.mxu0 0
        %1423 = vmatprep.subr.bf16.mxu0 0
        %1424 = vmatpush1.bf16.msra.mxu0 0
        %1425 = vmatprep.subr.bf16.mxu0 0
        %1426 = vmatpush1.bf16.msra.mxu0 0
        %1427 = vmatprep.subr.bf16.mxu0 0
        %1428 = vmatpush1.bf16.msra.mxu0 0
        %1429 = vmatprep.subr.bf16.mxu0 0
        %1430 = vmatpush1.bf16.msra.mxu0 0
        %1431 = vmatprep.subr.bf16.mxu0 0
        %1432 = vmatpush1.bf16.msra.mxu0 0
        %1433 = vmatprep.subr.bf16.mxu0 0
        %1434 = vmatpush1.bf16.msra.mxu0 0
        %1435 = vmatprep.subr.bf16.mxu0 0
        %1436 = vmatpush1.bf16.msra.mxu0 0
        %1437 = vmatprep.subr.bf16.mxu0 0
        %1438 = vmatpush1.bf16.msra.mxu0 0
        %1439 = vmatprep.subr.bf16.mxu0 0
        %1440 = vmatpush1.bf16.msra.mxu0 0
        %1441 = vmatprep.subr.bf16.mxu0 0
        %1442 = vmatpush1.bf16.msra.mxu0 0
        %1443 = vmatprep.mubr.bf16.mxu0 0
        %1444 = vmatmul.mubr.bf16.gmra.mrb[0].mxu0 %v1409
        %v1445 = vpop.f32.mrb[0].mxu0
        %v1446 = vadd.f32 0.0, %v1445
        %v1447 = vpop.f32.mrb[0].mxu0
        %v1448 = vpop.f32.mrb[0].mxu0
        %v1449 = vadd.f32 0.0, %v1448
        %v1450 = vpop.f32.mrb[0].mxu0
        %1451 = vdwg.mxu0
        %v1452 = vpack.c.bf16 %v1449, %v1446
        %v1454 = vsel %vm472, %v1452, 0
        %1456 = vmatprep.subr.bf16.mxu0 0
        %1457 = vmatpush1.bf16.xpose.msra.mxu0 %v1454
        %1458 = vmatprep.subr.bf16.mxu0 0
        %1459 = vmatpush1.bf16.xpose.msra.mxu0 0
        %1460 = vmatprep.subr.bf16.mxu0 0
        %1461 = vmatpush1.bf16.xpose.msra.mxu0 0
        %1462 = vmatprep.subr.bf16.mxu0 0
        %1463 = vmatpush1.bf16.xpose.msra.mxu0 0
        %1464 = vmatprep.subr.bf16.mxu0 0
        %1465 = vmatpush1.bf16.xpose.msra.mxu0 0
        %1466 = vmatprep.subr.bf16.mxu0 0
        %1467 = vmatpush1.bf16.xpose.msra.mxu0 0
        %1468 = vmatprep.subr.bf16.mxu0 0
        %1469 = vmatpush1.bf16.xpose.msra.mxu0 0
        %1470 = vmatprep.subr.bf16.mxu0 0
        %1471 = vmatpush1.bf16.xpose.msra.mxu0 0
        %1472 = vmatprep.subr.bf16.mxu0 0
        %1473 = vmatpush1.bf16.xpose.msra.mxu0 0
        %1474 = vmatprep.subr.bf16.mxu0 0
        %1475 = vmatpush1.bf16.xpose.msra.mxu0 0
        %1476 = vmatprep.subr.bf16.mxu0 0
        %1477 = vmatpush1.bf16.xpose.msra.mxu0 0
        %1478 = vmatprep.subr.bf16.mxu0 0
        %1479 = vmatpush1.bf16.xpose.msra.mxu0 0
        %1480 = vmatprep.subr.bf16.mxu0 0
        %1481 = vmatpush1.bf16.xpose.msra.mxu0 0
        %1482 = vmatprep.subr.bf16.mxu0 0
        %1483 = vmatpush1.bf16.xpose.msra.mxu0 0
        %1484 = vmatprep.subr.bf16.mxu0 0
        %1485 = vmatpush1.bf16.xpose.msra.mxu0 0
        %1486 = vmatprep.subr.bf16.mxu0 0
        %1487 = vmatpush1.bf16.xpose.msra.mxu0 0
        %1488 = vmatprep.mubr.bf16.mxu0 0
        %1489 = vmatmul.mubr.bf16.gmra.mrb[0].mxu0 %v1454
        %v1490 = vpop.f32.mrb[0].mxu0
        %v1491 = vadd.f32 0.0, %v1490
        %v1492 = vpop.f32.mrb[0].mxu0
        %v1493 = vpop.f32.mrb[0].mxu0
        %v1494 = vadd.f32 0.0, %v1493
        %v1495 = vpop.f32.mrb[0].mxu0
        %1496 = vdwg.mxu0
        %v1497 = vxor.u32 %v1491, 2147483648
        %v1498 = vxor.u32 %v1494, 2147483648
        %v1499 = vmul.f32 %v1497, 1.442695
        %v1500 = vpow.pop %v1499
        %v1501 = vmul.f32 %v1498, 1.442695
        %v1502 = vpow.pop %v1501
        %v1503 = vadd.f32 %v1500, 1.0
        %v1504 = vadd.f32 %v1502, 1.0
        %v1505 = vrcp.pop %v1503
        %v1506 = vmul.f32 1.0, %v1505
        %v1507 = vrcp.pop %v1504
        %v1508 = vmul.f32 1.0, %v1507
        %1509 = vst.msk [vmem:[%s379] sm:$0xff] %vm591, %v1506
        %1510 = vst.msk [vmem:[%s379 + $0x8] sm:$0xff] %vm591, %v1508
        %s1511 = sand.u32 %s269, 1
        %s1512 = scalar_lea.sflag [#allocation3], %s1511
        %s1513 = sand.u32 %s269, 1
        %s1514 = smul.addr %s1513, 16
        %s1515 = scalar_lea.vmem [#allocation2], %s1514
        // Predicated region
        $region65: #{tpu_custom_call.1} parent=63 // pred_check
          %p1516 = pneg %p279
        $region66: #{tpu_custom_call.1} parent=63 // pred_check_branch
          %1518 = sbr.rel (%p1516) target = $region68
        $region67: #{tpu_custom_call.1} parent=63 // pred_region
          %s1520 = ssub.s32 256, 256
          %1521 = vsyncadd %s1512, %s1520
          %s1522 = smul.addr %s25, 2
          %s1523 = smul.addr %s1522, 128
          %s1524 = scalar_lea.hbm %s11, %s1523
          %s1525 = sshll.u32 %s1515, 4
          %s1526 = int_to_ptr.vmem [resolvable:$true] %s1525
          %1531 = dma.vmem_to_hbm [thread:$0]  %s1526, 256, %s1524, %s1512, 128, 128, 8
        $region68: #{tpu_custom_call.1} parent=63 // pred_fallthru
          _
      $region64: #{tpu_custom_call.1} parent=5 // pred_fallthru
        _
      %p1532 = scmp.le.s32.totalorder 2, %s20
      // Predicated region
      $region69: #{tpu_custom_call.1} parent=5 // pred_check
        %p1533 = pneg %p1532
      $region70: #{tpu_custom_call.1} parent=5 // pred_check_branch
        %1535 = sbr.rel (%p1533) target = $region72
      $region71: #{tpu_custom_call.1} parent=5 // pred_region
        %s1536 = ssub.s32 %s20, 2
        // Predicated region
        $region73: #{tpu_custom_call.1} parent=71 // pred_check
          %p1537 = pneg %p285
        $region74: #{tpu_custom_call.1} parent=71 // pred_check_branch
          %1539 = sbr.rel (%p1537) target = $region76
        $region75: #{tpu_custom_call.1} parent=71 // pred_region
          %s1540 = sand.u32 %s270, 1
          %s1541 = scalar_lea.sflag [#allocation3], %s1540
          %s1542 = sand.u32 %s270, 1
          %s1543 = smul.addr %s1542, 16
          %s1544 = scalar_lea.vmem [#allocation2], %s1543
          %1545 = dma.done %s1541, 256
        $region76: #{tpu_custom_call.1} parent=71 // pred_fallthru
          _
      $region72: #{tpu_custom_call.1} parent=5 // pred_fallthru
        _
    $region6: #{tpu_custom_call.1} parent=1 // loop_footer
      %s24 = sadd.s32 1, %s20
    $region7: #{tpu_custom_call.1} parent=1 // loop_footer_branch
      %19 = sbr.rel target = $region3
    $region8: #{tpu_custom_call.1} parent=1 // loop_exit
      _
    %1546 = vsyncpa [#allocation3], 1
    %s1547 = scalar_lea.sflag [#allocation3], 1
    %1548 = vsyncpa %s1547, 1

</llo_original>
